<compile_context>
chip_gen: v7x
topology: tpu7x:2x2x1
jax: 0.10.0
libtpu: 0.0.40
codegen_flags: <defaults>
</compile_context>

<pallas_src>
import functools

import jax
import jax.numpy as jnp
from jax.experimental import pallas as pl
from jax.experimental.pallas import tpu as pltpu


def _round_up(x, m):
    return ((x + m - 1) // m) * m


# ---------------------------------------------------------------------------
# Pallas kernel body
# ---------------------------------------------------------------------------
def _sm_kernel_body(sigma_ref, x_ref, xpt_ref, s_ref, cu_ref, su_ref,
                    t_ref, cv_ref, sv_ref, o_ref, *, num_mixture, D):
    # sigma_ref : SMEM (Q, D)   exp(log_covariances)  (cross-term coefficients)
    # x_ref     : VMEM (tn, D)  row tile of x
    # xpt_ref   : VMEM (D, tm)  column tile of x_prime^T
    # s_ref     : VMEM (tn, Q)  row term  -0.5*sum_d sigma*x^2 + log(coeff_q)
    # cu/su_ref : VMEM (tn, Q)  cos / sin (2*pi * x @ mu_q)
    # t_ref     : VMEM (Q, tm)  col term  -0.5*sum_d sigma*x'^2
    # cv/sv_ref : VMEM (Q, tm)  cos / sin (2*pi * mu_q @ x'^T)
    # o_ref     : VMEM (tn, tm) output tile
    x = x_ref[...]
    xpt = xpt_ref[...]
    # Hoist the per-dimension outer products once per tile; reused by all q.
    prods = [x[:, d:d + 1] * xpt[d:d + 1, :] for d in range(D)]   # each (tn, tm)

    s = s_ref[...]
    cu = cu_ref[...]
    su = su_ref[...]
    t = t_ref[...]
    cv = cv_ref[...]
    sv = sv_ref[...]

    acc = jnp.zeros(o_ref.shape, jnp.float32)
    # Q and D are small static ints -> fully unrolled.
    for q in range(num_mixture):
        e = s[:, q:q + 1] + t[q:q + 1, :]                 # rank-1 part (log-coeff folded in)
        for d in range(D):
            e = e + sigma_ref[q, d] * prods[d]            # cross term (D FMAs/elem)
        cosf = cu[:, q:q + 1] * cv[q:q + 1, :] + su[:, q:q + 1] * sv[q:q + 1, :]
        acc = acc + jnp.exp(e) * cosf                     # exp on EUP, mul/add on VPU
    o_ref[...] = acc


# ---------------------------------------------------------------------------
# Wrapper: parameter / feature preprocessing (glue) + pallas_call
# ---------------------------------------------------------------------------
def sm_kernel_matrix(x, x_prime, log_weights, means, log_covariances,
                     *, tn=256, tm=1024):
    N, D = x.shape
    M = x_prime.shape[0]
    Q = log_weights.shape[0]

    # Clamp tiles to the (aligned) problem size, keep sublane/lane alignment.
    tn = min(tn, _round_up(N, 8))
    tm = min(tm, _round_up(M, 128))
    N_pad = _round_up(N, tn)
    M_pad = _round_up(M, tm)

    # ---- Host-side constant folding (plain JAX glue, all tiny) --------------
    weights = jnp.exp(log_weights.astype(jnp.float32))            # (Q,)
    total_weights = jnp.sum(weights)
    sigma = jnp.exp(log_covariances.astype(jnp.float32))          # (Q, D)
    det_sigma = jnp.prod(sigma, axis=1)                           # (Q,)
    norm_factor = jnp.sqrt(det_sigma) / (2.0 * jnp.pi) ** (D / 2.0)
    # coeff > 0; if it ever underflowed, log_coeff=-inf -> exp(-inf+finite)=0,
    # which is still the correct limit (no NaN risk: cos factor is finite).
    coeff = weights / total_weights * norm_factor                 # (Q,)
    log_coeff = jnp.log(coeff)
    a = -0.5 * sigma                                              # (Q, D)
    means2pi = (2.0 * jnp.pi) * means.astype(jnp.float32)         # (Q, D)

    x_f = x.astype(jnp.float32)
    xpt = x_prime.T.astype(jnp.float32)                           # (D, M)
    if N_pad != N:
        x_f = jnp.pad(x_f, ((0, N_pad - N), (0, 0)))
    if M_pad != M:
        xpt = jnp.pad(xpt, ((0, 0), (0, M_pad - M)))

    # ---- Rank-1 row/column features (O((N+M)*Q*D) << O(N*M*Q)) --------------
    s_row = (x_f * x_f) @ a.T + log_coeff[None, :]                # (N_pad, Q)
    t_col = a @ (xpt * xpt)                                       # (Q, M_pad)
    u = x_f @ means2pi.T                                          # (N_pad, Q)
    v = means2pi @ xpt                                            # (Q, M_pad)
    cu, su = jnp.cos(u), jnp.sin(u)
    cv, sv = jnp.cos(v), jnp.sin(v)

    body = functools.partial(_sm_kernel_body, num_mixture=Q, D=D)
    grid = (N_pad // tn, M_pad // tm)

    out = pl.pallas_call(
        body,
        out_shape=jax.ShapeDtypeStruct((N_pad, M_pad), jnp.float32),
        grid_spec=pltpu.PrefetchScalarGridSpec(
            num_scalar_prefetch=0,
            grid=grid,
            in_specs=[
                pl.BlockSpec(memory_space=pltpu.MemorySpace.SMEM),  # sigma (Q, D)
                pl.BlockSpec((tn, D), lambda i, j: (i, 0)),         # x row tile
                pl.BlockSpec((D, tm), lambda i, j: (0, j)),         # x'^T col tile
                pl.BlockSpec((tn, Q), lambda i, j: (i, 0)),         # s_row
                pl.BlockSpec((tn, Q), lambda i, j: (i, 0)),         # cos_u
                pl.BlockSpec((tn, Q), lambda i, j: (i, 0)),         # sin_u
                pl.BlockSpec((Q, tm), lambda i, j: (0, j)),         # t_col
                pl.BlockSpec((Q, tm), lambda i, j: (0, j)),         # cos_v
                pl.BlockSpec((Q, tm), lambda i, j: (0, j)),         # sin_v
            ],
            out_specs=pl.BlockSpec((tn, tm), lambda i, j: (i, j)),
        ),
        compiler_params=pltpu.CompilerParams(
            dimension_semantics=("parallel", "parallel"),
            vmem_limit_bytes=48 * 1024 * 1024,
        ),
    )(sigma, x_f, xpt, s_row, cu, su, t_col, cv, sv)

    # TODO(synk): padded case incurs one extra HBM round trip for this slice;
    # a padding-aware consumer could take the (N_pad, M_pad) array directly.
    return out[:N, :M]


# ---------------------------------------------------------------------------
# Pure-JAX reference (mirrors the PyTorch forward exactly)
# ---------------------------------------------------------------------------
def sm_kernel_reference(x, x_prime, log_weights, means, log_covariances):
    D = x.shape[1]
    w = jnp.exp(log_weights)
    total = jnp.sum(w)
    sigma = jnp.exp(log_covariances)
    diff = x[:, None, :] - x_prime[None, :, :]            # (N, M, D)
    out = jnp.zeros((x.shape[0], x_prime.shape[0]), jnp.float32)
    for q in range(log_weights.shape[0]):
        det = jnp.prod(sigma[q])
        norm = det ** 0.5 / (2.0 * jnp.pi) ** (D / 2.0)
        exponent = -0.5 * jnp.einsum('ijd,d,ijd->ij', diff, sigma[q], diff)
        cosine = jnp.cos(2.0 * jnp.pi * jnp.einsum('ijd,d->ij', diff, means[q]))
        out = out + w[q] / total * norm * jnp.exp(exponent) * cosine
    return out


if __name__ == "__main__":
    key = jax.random.PRNGKey(0)
    k_means, k_cov, k_x, k_xp, k_x2, k_xp2 = jax.random.split(key, 6)

    # Module config: num_mixture=4, D=2, kernel_mode='fixed'
    num_mixture, D = 4, 2
    log_weights = jnp.zeros((num_mixture,), jnp.float32)            # torch.zeros
    means = jax.random.normal(k_means, (num_mixture, D), jnp.float32)
    log_covariances = jax.random.normal(k_cov, (num_mixture, D), jnp.float32)

    # --- Test 1: multi-tile grid ---------------------------------------------
    N, M = 256, 512
    x = jax.random.normal(k_x, (N, D), jnp.float32)
    x_prime = jax.random.normal(k_xp, (M, D), jnp.float32)

    out = sm_kernel_matrix(x, x_prime, log_weights, means, log_covariances,
                           tn=64, tm=128)
    out = jax.block_until_ready(out)
    ref = sm_kernel_reference(x, x_prime, log_weights, means, log_covariances)
    assert out.shape == (N, M)
    assert jnp.allclose(out, ref, rtol=1e-4, atol=1e-4), \
        f"max abs err = {jnp.max(jnp.abs(out - ref))}"

    # --- Test 2: non-aligned shapes (exercises padding) + default big tiles --
    N2, M2 = 200, 300
    x2 = jax.random.normal(k_x2, (N2, D), jnp.float32)
    x_prime2 = jax.random.normal(k_xp2, (M2, D), jnp.float32)

    out2 = sm_kernel_matrix(x2, x_prime2, log_weights, means, log_covariances)
    out2 = jax.block_until_ready(out2)
    ref2 = sm_kernel_reference(x2, x_prime2, log_weights, means, log_covariances)
    assert out2.shape == (N2, M2)
    assert jnp.allclose(out2, ref2, rtol=1e-4, atol=1e-4), \
        f"max abs err = {jnp.max(jnp.abs(out2 - ref2))}"

    print("KERNEL_OK")
</pallas_src>

<mosaic_0001>
module attributes {stable_mosaic.version = 11 : i64} {
  func.func @_sm_kernel_body(%arg0: i32, %arg1: i32, %arg2: memref<4x2xf32, #tpu.memory_space<smem>>, %arg3: memref<64x2xf32, #tpu.memory_space<vmem>>, %arg4: memref<2x128xf32, #tpu.memory_space<vmem>>, %arg5: memref<64x4xf32, #tpu.memory_space<vmem>>, %arg6: memref<64x4xf32, #tpu.memory_space<vmem>>, %arg7: memref<64x4xf32, #tpu.memory_space<vmem>>, %arg8: memref<4x128xf32, #tpu.memory_space<vmem>>, %arg9: memref<4x128xf32, #tpu.memory_space<vmem>>, %arg10: memref<4x128xf32, #tpu.memory_space<vmem>>, %arg11: memref<64x128xf32, #tpu.memory_space<vmem>>) attributes {dimension_semantics = [#tpu.dimension_semantics<parallel>, #tpu.dimension_semantics<parallel>], iteration_bounds = array<i64: 4, 4>, scalar_prefetch = 0 : i64, scratch_operands = 0 : i64, tpu.core_type = #tpu.core_type<tc>, window_params = [{transform_indices = @transform_0, window_bounds = array<i64: 4, 2>}, {transform_indices = @transform_1, window_bounds = array<i64: 64, 2>}, {transform_indices = @transform_2, window_bounds = array<i64: 2, 128>}, {transform_indices = @transform_3, window_bounds = array<i64: 64, 4>}, {transform_indices = @transform_4, window_bounds = array<i64: 64, 4>}, {transform_indices = @transform_5, window_bounds = array<i64: 64, 4>}, {transform_indices = @transform_6, window_bounds = array<i64: 4, 128>}, {transform_indices = @transform_7, window_bounds = array<i64: 4, 128>}, {transform_indices = @transform_8, window_bounds = array<i64: 4, 128>}, {transform_indices = @transform_9, window_bounds = array<i64: 64, 128>}]} {
    %c0 = arith.constant 0 : index
    %c0_0 = arith.constant 0 : index
    %0 = vector.load %arg3[%c0, %c0_0] : memref<64x2xf32, #tpu.memory_space<vmem>>, vector<64x2xf32>
    %c0_1 = arith.constant 0 : index
    %c0_2 = arith.constant 0 : index
    %1 = vector.load %arg4[%c0_1, %c0_2] : memref<2x128xf32, #tpu.memory_space<vmem>>, vector<2x128xf32>
    %2 = vector.extract_strided_slice %0 {offsets = [0, 0], sizes = [64, 1], strides = [1, 1]} : vector<64x2xf32> to vector<64x1xf32>
    %3 = vector.extract_strided_slice %1 {offsets = [0, 0], sizes = [1, 128], strides = [1, 1]} : vector<2x128xf32> to vector<1x128xf32>
    %4 = vector.broadcast %2 : vector<64x1xf32> to vector<64x128xf32>
    %5 = vector.broadcast %3 : vector<1x128xf32> to vector<64x128xf32>
    %6 = arith.mulf %4, %5 : vector<64x128xf32>
    %7 = vector.extract_strided_slice %0 {offsets = [0, 1], sizes = [64, 1], strides = [1, 1]} : vector<64x2xf32> to vector<64x1xf32>
    %8 = vector.extract_strided_slice %1 {offsets = [1, 0], sizes = [1, 128], strides = [1, 1]} : vector<2x128xf32> to vector<1x128xf32>
    %9 = vector.broadcast %7 : vector<64x1xf32> to vector<64x128xf32>
    %10 = vector.broadcast %8 : vector<1x128xf32> to vector<64x128xf32>
    %11 = arith.mulf %9, %10 : vector<64x128xf32>
    %c0_3 = arith.constant 0 : index
    %c0_4 = arith.constant 0 : index
    %12 = vector.load %arg5[%c0_3, %c0_4] : memref<64x4xf32, #tpu.memory_space<vmem>>, vector<64x4xf32>
    %c0_5 = arith.constant 0 : index
    %c0_6 = arith.constant 0 : index
    %13 = vector.load %arg6[%c0_5, %c0_6] : memref<64x4xf32, #tpu.memory_space<vmem>>, vector<64x4xf32>
    %c0_7 = arith.constant 0 : index
    %c0_8 = arith.constant 0 : index
    %14 = vector.load %arg7[%c0_7, %c0_8] : memref<64x4xf32, #tpu.memory_space<vmem>>, vector<64x4xf32>
    %c0_9 = arith.constant 0 : index
    %c0_10 = arith.constant 0 : index
    %15 = vector.load %arg8[%c0_9, %c0_10] : memref<4x128xf32, #tpu.memory_space<vmem>>, vector<4x128xf32>
    %c0_11 = arith.constant 0 : index
    %c0_12 = arith.constant 0 : index
    %16 = vector.load %arg9[%c0_11, %c0_12] : memref<4x128xf32, #tpu.memory_space<vmem>>, vector<4x128xf32>
    %c0_13 = arith.constant 0 : index
    %c0_14 = arith.constant 0 : index
    %17 = vector.load %arg10[%c0_13, %c0_14] : memref<4x128xf32, #tpu.memory_space<vmem>>, vector<4x128xf32>
    %cst = arith.constant 0.000000e+00 : f32
    %18 = vector.broadcast %cst : f32 to vector<64x128xf32>
    %19 = vector.extract_strided_slice %12 {offsets = [0, 0], sizes = [64, 1], strides = [1, 1]} : vector<64x4xf32> to vector<64x1xf32>
    %20 = vector.extract_strided_slice %15 {offsets = [0, 0], sizes = [1, 128], strides = [1, 1]} : vector<4x128xf32> to vector<1x128xf32>
    %21 = vector.broadcast %19 : vector<64x1xf32> to vector<64x128xf32>
    %22 = vector.broadcast %20 : vector<1x128xf32> to vector<64x128xf32>
    %23 = arith.addf %21, %22 : vector<64x128xf32>
    %c0_15 = arith.constant 0 : index
    %c0_16 = arith.constant 0 : index
    %24 = memref.load %arg2[%c0_15, %c0_16] : memref<4x2xf32, #tpu.memory_space<smem>>
    %25 = vector.broadcast %24 : f32 to vector<64x128xf32>
    %26 = arith.mulf %25, %6 : vector<64x128xf32>
    %27 = arith.addf %23, %26 : vector<64x128xf32>
    %c0_17 = arith.constant 0 : index
    %c1 = arith.constant 1 : index
    %28 = memref.load %arg2[%c0_17, %c1] : memref<4x2xf32, #tpu.memory_space<smem>>
    %29 = vector.broadcast %28 : f32 to vector<64x128xf32>
    %30 = arith.mulf %29, %11 : vector<64x128xf32>
    %31 = arith.addf %27, %30 : vector<64x128xf32>
    %32 = vector.extract_strided_slice %13 {offsets = [0, 0], sizes = [64, 1], strides = [1, 1]} : vector<64x4xf32> to vector<64x1xf32>
    %33 = vector.extract_strided_slice %16 {offsets = [0, 0], sizes = [1, 128], strides = [1, 1]} : vector<4x128xf32> to vector<1x128xf32>
    %34 = vector.broadcast %32 : vector<64x1xf32> to vector<64x128xf32>
    %35 = vector.broadcast %33 : vector<1x128xf32> to vector<64x128xf32>
    %36 = arith.mulf %34, %35 : vector<64x128xf32>
    %37 = vector.extract_strided_slice %14 {offsets = [0, 0], sizes = [64, 1], strides = [1, 1]} : vector<64x4xf32> to vector<64x1xf32>
    %38 = vector.extract_strided_slice %17 {offsets = [0, 0], sizes = [1, 128], strides = [1, 1]} : vector<4x128xf32> to vector<1x128xf32>
    %39 = vector.broadcast %37 : vector<64x1xf32> to vector<64x128xf32>
    %40 = vector.broadcast %38 : vector<1x128xf32> to vector<64x128xf32>
    %41 = arith.mulf %39, %40 : vector<64x128xf32>
    %42 = arith.addf %36, %41 : vector<64x128xf32>
    %43 = math.exp %31 : vector<64x128xf32>
    %44 = arith.mulf %43, %42 : vector<64x128xf32>
    %45 = arith.addf %18, %44 : vector<64x128xf32>
    %46 = vector.extract_strided_slice %12 {offsets = [0, 1], sizes = [64, 1], strides = [1, 1]} : vector<64x4xf32> to vector<64x1xf32>
    %47 = vector.extract_strided_slice %15 {offsets = [1, 0], sizes = [1, 128], strides = [1, 1]} : vector<4x128xf32> to vector<1x128xf32>
    %48 = vector.broadcast %46 : vector<64x1xf32> to vector<64x128xf32>
    %49 = vector.broadcast %47 : vector<1x128xf32> to vector<64x128xf32>
    %50 = arith.addf %48, %49 : vector<64x128xf32>
    %c1_18 = arith.constant 1 : index
    %c0_19 = arith.constant 0 : index
    %51 = memref.load %arg2[%c1_18, %c0_19] : memref<4x2xf32, #tpu.memory_space<smem>>
    %52 = vector.broadcast %51 : f32 to vector<64x128xf32>
    %53 = arith.mulf %52, %6 : vector<64x128xf32>
    %54 = arith.addf %50, %53 : vector<64x128xf32>
    %c1_20 = arith.constant 1 : index
    %c1_21 = arith.constant 1 : index
    %55 = memref.load %arg2[%c1_20, %c1_21] : memref<4x2xf32, #tpu.memory_space<smem>>
    %56 = vector.broadcast %55 : f32 to vector<64x128xf32>
    %57 = arith.mulf %56, %11 : vector<64x128xf32>
    %58 = arith.addf %54, %57 : vector<64x128xf32>
    %59 = vector.extract_strided_slice %13 {offsets = [0, 1], sizes = [64, 1], strides = [1, 1]} : vector<64x4xf32> to vector<64x1xf32>
    %60 = vector.extract_strided_slice %16 {offsets = [1, 0], sizes = [1, 128], strides = [1, 1]} : vector<4x128xf32> to vector<1x128xf32>
    %61 = vector.broadcast %59 : vector<64x1xf32> to vector<64x128xf32>
    %62 = vector.broadcast %60 : vector<1x128xf32> to vector<64x128xf32>
    %63 = arith.mulf %61, %62 : vector<64x128xf32>
    %64 = vector.extract_strided_slice %14 {offsets = [0, 1], sizes = [64, 1], strides = [1, 1]} : vector<64x4xf32> to vector<64x1xf32>
    %65 = vector.extract_strided_slice %17 {offsets = [1, 0], sizes = [1, 128], strides = [1, 1]} : vector<4x128xf32> to vector<1x128xf32>
    %66 = vector.broadcast %64 : vector<64x1xf32> to vector<64x128xf32>
    %67 = vector.broadcast %65 : vector<1x128xf32> to vector<64x128xf32>
    %68 = arith.mulf %66, %67 : vector<64x128xf32>
    %69 = arith.addf %63, %68 : vector<64x128xf32>
    %70 = math.exp %58 : vector<64x128xf32>
    %71 = arith.mulf %70, %69 : vector<64x128xf32>
    %72 = arith.addf %45, %71 : vector<64x128xf32>
    %73 = vector.extract_strided_slice %12 {offsets = [0, 2], sizes = [64, 1], strides = [1, 1]} : vector<64x4xf32> to vector<64x1xf32>
    %74 = vector.extract_strided_slice %15 {offsets = [2, 0], sizes = [1, 128], strides = [1, 1]} : vector<4x128xf32> to vector<1x128xf32>
    %75 = vector.broadcast %73 : vector<64x1xf32> to vector<64x128xf32>
    %76 = vector.broadcast %74 : vector<1x128xf32> to vector<64x128xf32>
    %77 = arith.addf %75, %76 : vector<64x128xf32>
    %c2 = arith.constant 2 : index
    %c0_22 = arith.constant 0 : index
    %78 = memref.load %arg2[%c2, %c0_22] : memref<4x2xf32, #tpu.memory_space<smem>>
    %79 = vector.broadcast %78 : f32 to vector<64x128xf32>
    %80 = arith.mulf %79, %6 : vector<64x128xf32>
    %81 = arith.addf %77, %80 : vector<64x128xf32>
    %c2_23 = arith.constant 2 : index
    %c1_24 = arith.constant 1 : index
    %82 = memref.load %arg2[%c2_23, %c1_24] : memref<4x2xf32, #tpu.memory_space<smem>>
    %83 = vector.broadcast %82 : f32 to vector<64x128xf32>
    %84 = arith.mulf %83, %11 : vector<64x128xf32>
    %85 = arith.addf %81, %84 : vector<64x128xf32>
    %86 = vector.extract_strided_slice %13 {offsets = [0, 2], sizes = [64, 1], strides = [1, 1]} : vector<64x4xf32> to vector<64x1xf32>
    %87 = vector.extract_strided_slice %16 {offsets = [2, 0], sizes = [1, 128], strides = [1, 1]} : vector<4x128xf32> to vector<1x128xf32>
    %88 = vector.broadcast %86 : vector<64x1xf32> to vector<64x128xf32>
    %89 = vector.broadcast %87 : vector<1x128xf32> to vector<64x128xf32>
    %90 = arith.mulf %88, %89 : vector<64x128xf32>
    %91 = vector.extract_strided_slice %14 {offsets = [0, 2], sizes = [64, 1], strides = [1, 1]} : vector<64x4xf32> to vector<64x1xf32>
    %92 = vector.extract_strided_slice %17 {offsets = [2, 0], sizes = [1, 128], strides = [1, 1]} : vector<4x128xf32> to vector<1x128xf32>
    %93 = vector.broadcast %91 : vector<64x1xf32> to vector<64x128xf32>
    %94 = vector.broadcast %92 : vector<1x128xf32> to vector<64x128xf32>
    %95 = arith.mulf %93, %94 : vector<64x128xf32>
    %96 = arith.addf %90, %95 : vector<64x128xf32>
    %97 = math.exp %85 : vector<64x128xf32>
    %98 = arith.mulf %97, %96 : vector<64x128xf32>
    %99 = arith.addf %72, %98 : vector<64x128xf32>
    %100 = vector.extract_strided_slice %12 {offsets = [0, 3], sizes = [64, 1], strides = [1, 1]} : vector<64x4xf32> to vector<64x1xf32>
    %101 = vector.extract_strided_slice %15 {offsets = [3, 0], sizes = [1, 128], strides = [1, 1]} : vector<4x128xf32> to vector<1x128xf32>
    %102 = vector.broadcast %100 : vector<64x1xf32> to vector<64x128xf32>
    %103 = vector.broadcast %101 : vector<1x128xf32> to vector<64x128xf32>
    %104 = arith.addf %102, %103 : vector<64x128xf32>
    %c3 = arith.constant 3 : index
    %c0_25 = arith.constant 0 : index
    %105 = memref.load %arg2[%c3, %c0_25] : memref<4x2xf32, #tpu.memory_space<smem>>
    %106 = vector.broadcast %105 : f32 to vector<64x128xf32>
    %107 = arith.mulf %106, %6 : vector<64x128xf32>
    %108 = arith.addf %104, %107 : vector<64x128xf32>
    %c3_26 = arith.constant 3 : index
    %c1_27 = arith.constant 1 : index
    %109 = memref.load %arg2[%c3_26, %c1_27] : memref<4x2xf32, #tpu.memory_space<smem>>
    %110 = vector.broadcast %109 : f32 to vector<64x128xf32>
    %111 = arith.mulf %110, %11 : vector<64x128xf32>
    %112 = arith.addf %108, %111 : vector<64x128xf32>
    %113 = vector.extract_strided_slice %13 {offsets = [0, 3], sizes = [64, 1], strides = [1, 1]} : vector<64x4xf32> to vector<64x1xf32>
    %114 = vector.extract_strided_slice %16 {offsets = [3, 0], sizes = [1, 128], strides = [1, 1]} : vector<4x128xf32> to vector<1x128xf32>
    %115 = vector.broadcast %113 : vector<64x1xf32> to vector<64x128xf32>
    %116 = vector.broadcast %114 : vector<1x128xf32> to vector<64x128xf32>
    %117 = arith.mulf %115, %116 : vector<64x128xf32>
    %118 = vector.extract_strided_slice %14 {offsets = [0, 3], sizes = [64, 1], strides = [1, 1]} : vector<64x4xf32> to vector<64x1xf32>
    %119 = vector.extract_strided_slice %17 {offsets = [3, 0], sizes = [1, 128], strides = [1, 1]} : vector<4x128xf32> to vector<1x128xf32>
    %120 = vector.broadcast %118 : vector<64x1xf32> to vector<64x128xf32>
    %121 = vector.broadcast %119 : vector<1x128xf32> to vector<64x128xf32>
    %122 = arith.mulf %120, %121 : vector<64x128xf32>
    %123 = arith.addf %117, %122 : vector<64x128xf32>
    %124 = math.exp %112 : vector<64x128xf32>
    %125 = arith.mulf %124, %123 : vector<64x128xf32>
    %126 = arith.addf %99, %125 : vector<64x128xf32>
    %c0_28 = arith.constant 0 : index
    %c0_29 = arith.constant 0 : index
    %127 = vector.load %arg11[%c0_28, %c0_29] : memref<64x128xf32, #tpu.memory_space<vmem>>, vector<64x128xf32>
    tpu.vector_store %arg11[%c0_28, %c0_29], %126 {strides = array<i32>} : memref<64x128xf32, #tpu.memory_space<vmem>>, vector<64x128xf32>,
    return
  }
  func.func @transform_0(%arg0: i32, %arg1: i32) -> (i32, i32) {
    %c0_i32 = arith.constant 0 : i32
    %c0_i32_0 = arith.constant 0 : i32
    %c0_i32_1 = arith.constant 0 : i32
    return %c0_i32, %c0_i32_0 : i32, i32
  }
  func.func @transform_1(%arg0: i32, %arg1: i32) -> (i32, i32) {
    %c0_i32 = arith.constant 0 : i32
    %c0_i32_0 = arith.constant 0 : i32
    return %arg0, %c0_i32 : i32, i32
  }
  func.func @transform_2(%arg0: i32, %arg1: i32) -> (i32, i32) {
    %c0_i32 = arith.constant 0 : i32
    %c0_i32_0 = arith.constant 0 : i32
    return %c0_i32, %arg1 : i32, i32
  }
  func.func @transform_3(%arg0: i32, %arg1: i32) -> (i32, i32) {
    %c0_i32 = arith.constant 0 : i32
    %c0_i32_0 = arith.constant 0 : i32
    return %arg0, %c0_i32 : i32, i32
  }
  func.func @transform_4(%arg0: i32, %arg1: i32) -> (i32, i32) {
    %c0_i32 = arith.constant 0 : i32
    %c0_i32_0 = arith.constant 0 : i32
    return %arg0, %c0_i32 : i32, i32
  }
  func.func @transform_5(%arg0: i32, %arg1: i32) -> (i32, i32) {
    %c0_i32 = arith.constant 0 : i32
    %c0_i32_0 = arith.constant 0 : i32
    return %arg0, %c0_i32 : i32, i32
  }
  func.func @transform_6(%arg0: i32, %arg1: i32) -> (i32, i32) {
    %c0_i32 = arith.constant 0 : i32
    %c0_i32_0 = arith.constant 0 : i32
    return %c0_i32, %arg1 : i32, i32
  }
  func.func @transform_7(%arg0: i32, %arg1: i32) -> (i32, i32) {
    %c0_i32 = arith.constant 0 : i32
    %c0_i32_0 = arith.constant 0 : i32
    return %c0_i32, %arg1 : i32, i32
  }
  func.func @transform_8(%arg0: i32, %arg1: i32) -> (i32, i32) {
    %c0_i32 = arith.constant 0 : i32
    %c0_i32_0 = arith.constant 0 : i32
    return %c0_i32, %arg1 : i32, i32
  }
  func.func @transform_9(%arg0: i32, %arg1: i32) -> (i32, i32) {
    %c0_i32 = arith.constant 0 : i32
    return %arg0, %arg1 : i32, i32
  }
}

</mosaic_0001>

<llo_original>
// kernel: tpu_custom_call.1
$region0: #{tpu_custom_call.1}
  #allocation0 [shape = 'u32[]', space=smem, size = 0x4, offset = 0x4, fixed_abs, tag = 'smem constant byte address 0x4 - core index']
  #allocation1 [shape = 'u32[144,128]{1,0:T(1,128)}', space=vmem, size = 0x12000, scoped, tag = 'internal scratch']
  %s0 = inlined_call_operand.vmem [shape: f32[4,2], index: 0, kind: input, shape index: {}]
  %s1 = inlined_call_operand.vmem [shape: f32[256,2], index: 1, kind: input, shape index: {}]
  %s2 = inlined_call_operand.vmem [shape: f32[2,512], index: 2, kind: input, shape index: {}]
  %s3 = inlined_call_operand.vmem [shape: f32[256,4], index: 3, kind: input, shape index: {}]
  %s4 = inlined_call_operand.vmem [shape: f32[256,4], index: 4, kind: input, shape index: {}]
  %s5 = inlined_call_operand.vmem [shape: f32[256,4], index: 5, kind: input, shape index: {}]
  %s6 = inlined_call_operand.vmem [shape: f32[4,512], index: 6, kind: input, shape index: {}]
  %s7 = inlined_call_operand.vmem [shape: f32[4,512], index: 7, kind: input, shape index: {}]
  %s8 = inlined_call_operand.vmem [shape: f32[4,512], index: 8, kind: input, shape index: {}]
  %s9 = inlined_call_operand.hbm [shape: f32[256,512], index: 9, kind: output, shape index: {}]
  %s10 = sld [smem:[#allocation0]]
  $region73: #{tpu_custom_call.1} parent=0
    _
  %s12 = ssub.s32 1, %s10
  %s13 = scalar_select 0, %s12, %s10
  $region1: #{tpu_custom_call.1} parent=0
    #allocation2 [shape = 'u8[2048]{0}', space=smem, size = 0x800, scoped, tag = 'input window, operand 0, single buffered']
    #allocation3 [shape = 's32[2]{0}', space=sflag, size = 0x8, scoped, tag = 'scoped memory for tpu_custom_call.1']
    #allocation4 [shape = 's32[2]{0}', space=sflag, size = 0x8, scoped, tag = 'scoped memory for tpu_custom_call.1']
    #allocation5 [shape = 'u8[65536]{0}', space=vmem, size = 0x10000, scoped, tag = 'output window, operand 0']
    %14 = vsyncpa [#allocation4], 0
    %15 = vsyncpa [#allocation3], 0
    %s16 = scalar_lea.sflag [#allocation3], 1
    %17 = vsyncpa %s16, 0
    loop: start=0, step=1, limit=18
    $region2: #{tpu_custom_call.1} parent=1 // loop_pre_header
      _
    $region3: #{tpu_custom_call.1} parent=1 // loop_header
      %s19 = sphi 0, %s23
      %p20 = scmp.ge.s32.totalorder %s19, 18
      %s26 = sphi 0, %s38
      %s27 = sphi 0, %s34
      %s28 = sphi 0, %s26
      %s29 = sphi 0, %s27
      %s30 = sphi 0, %s28
      %s31 = sphi 0, %s29
      %s39 = sphi 0, %s39
      %s41 = sphi 0, %s39
      %s42 = sphi 0, %s41
      %s56 = sphi 0, %s42
      %s62 = sphi 0, %s64
      %s65 = sphi 0, %s62
      %s66 = sphi 0, %s65
      %s82 = sphi 0, %s66
      %s88 = sphi 0, %s90
      %s91 = sphi 0, %s88
      %s92 = sphi 0, %s91
      %s108 = sphi 0, %s92
      %s114 = sphi 0, %s116
      %s117 = sphi 0, %s114
      %s118 = sphi 0, %s117
      %s134 = sphi 0, %s118
      %s140 = sphi 0, %s142
      %s143 = sphi 0, %s140
      %s144 = sphi 0, %s143
      %s160 = sphi 0, %s144
      %s166 = sphi 0, %s168
      %s169 = sphi 0, %s166
      %s170 = sphi 0, %s169
      %s186 = sphi 0, %s170
      %s192 = sphi 0, %s194
      %s195 = sphi 0, %s192
      %s196 = sphi 0, %s195
      %s212 = sphi 0, %s196
      %s218 = sphi 0, %s220
      %s221 = sphi 0, %s218
      %s222 = sphi 0, %s221
      %s238 = sphi 0, %s222
      %s244 = sphi 0, %s246
      %s247 = sphi 0, %s244
      %s248 = sphi 0, %s247
      %s264 = sphi 0, %s248
      %s272 = sphi 0, %s274
      %s275 = sphi 0, %s272
      %s276 = sphi 0, %s275
      %s292 = sphi 0, %s276
    $region4: #{tpu_custom_call.1} parent=1 // loop_header_branch
      %22 = sbr.rel (%p20) target = $region8
    $region5: #{tpu_custom_call.1} parent=1 // loop_body
      %s24 = ssub.s32 %s19, 1
      %s25 = ssub.s32 %s19, 2
      %s32 = sadd.s32 1, %s27
      %p33 = scmp.ge.s32.totalorder %s32, 4
      %s34 = scalar_select %p33, 0, %s32
      %s35 = sadd.s32 1, %s26
      %s36 = scalar_select %p33, %s35, %s26
      %p37 = scmp.ge.s32.totalorder %s36, 4
      %s38 = scalar_select %p37, 0, %s36
      %s40 = sadd.s32 %s39, 1
      %p43 = scmp.eq.s32.totalorder %s19, 15
      %p44 = scmp.ne.s32.totalorder %s39, %s41
      %p45 = scmp.eq.s32.totalorder %s19, 0
      %p46 = por %p44, %p45
      %p47 = scmp.ne.s32.totalorder %s39, %s41
      %p48 = scmp.eq.s32.totalorder %s24, 15
      %p49 = por %p47, %p48
      %p50 = scmp.ne.s32.totalorder %s41, %s42
      %p51 = scmp.eq.s32.totalorder %s24, 0
      %p52 = por %p50, %p51
      %p53 = scmp.ne.s32.totalorder %s41, %s42
      %p54 = scmp.eq.s32.totalorder %s25, 15
      %p55 = por %p53, %p54
      %p57 = scmp.ne.s32.totalorder %s42, %s56
      %p58 = scmp.eq.s32.totalorder %s25, 0
      %p59 = por %p57, %p58
      %s60 = ssub.s32 %s26, %s38
      %p61 = scmp.eq.s32.totalorder %s60, 0
      %s63 = sadd.s32 %s62, 1
      %s64 = scalar_select %p61, %s62, %s63
      %p67 = pneg %p61
      %p68 = scmp.eq.s32.totalorder %s19, 15
      %p69 = por %p67, %p68
      %p70 = scmp.ne.s32.totalorder %s62, %s65
      %p71 = scmp.eq.s32.totalorder %s19, 0
      %p72 = por %p70, %p71
      %p73 = scmp.ne.s32.totalorder %s62, %s65
      %p74 = scmp.eq.s32.totalorder %s24, 15
      %p75 = por %p73, %p74
      %p76 = scmp.ne.s32.totalorder %s65, %s66
      %p77 = scmp.eq.s32.totalorder %s24, 0
      %p78 = por %p76, %p77
      %p79 = scmp.ne.s32.totalorder %s65, %s66
      %p80 = scmp.eq.s32.totalorder %s25, 15
      %p81 = por %p79, %p80
      %p83 = scmp.ne.s32.totalorder %s66, %s82
      %p84 = scmp.eq.s32.totalorder %s25, 0
      %p85 = por %p83, %p84
      %s86 = ssub.s32 %s27, %s34
      %p87 = scmp.eq.s32.totalorder %s86, 0
      %s89 = sadd.s32 %s88, 1
      %s90 = scalar_select %p87, %s88, %s89
      %p93 = pneg %p87
      %p94 = scmp.eq.s32.totalorder %s19, 15
      %p95 = por %p93, %p94
      %p96 = scmp.ne.s32.totalorder %s88, %s91
      %p97 = scmp.eq.s32.totalorder %s19, 0
      %p98 = por %p96, %p97
      %p99 = scmp.ne.s32.totalorder %s88, %s91
      %p100 = scmp.eq.s32.totalorder %s24, 15
      %p101 = por %p99, %p100
      %p102 = scmp.ne.s32.totalorder %s91, %s92
      %p103 = scmp.eq.s32.totalorder %s24, 0
      %p104 = por %p102, %p103
      %p105 = scmp.ne.s32.totalorder %s91, %s92
      %p106 = scmp.eq.s32.totalorder %s25, 15
      %p107 = por %p105, %p106
      %p109 = scmp.ne.s32.totalorder %s92, %s108
      %p110 = scmp.eq.s32.totalorder %s25, 0
      %p111 = por %p109, %p110
      %s112 = ssub.s32 %s26, %s38
      %p113 = scmp.eq.s32.totalorder %s112, 0
      %s115 = sadd.s32 %s114, 1
      %s116 = scalar_select %p113, %s114, %s115
      %p119 = pneg %p113
      %p120 = scmp.eq.s32.totalorder %s19, 15
      %p121 = por %p119, %p120
      %p122 = scmp.ne.s32.totalorder %s114, %s117
      %p123 = scmp.eq.s32.totalorder %s19, 0
      %p124 = por %p122, %p123
      %p125 = scmp.ne.s32.totalorder %s114, %s117
      %p126 = scmp.eq.s32.totalorder %s24, 15
      %p127 = por %p125, %p126
      %p128 = scmp.ne.s32.totalorder %s117, %s118
      %p129 = scmp.eq.s32.totalorder %s24, 0
      %p130 = por %p128, %p129
      %p131 = scmp.ne.s32.totalorder %s117, %s118
      %p132 = scmp.eq.s32.totalorder %s25, 15
      %p133 = por %p131, %p132
      %p135 = scmp.ne.s32.totalorder %s118, %s134
      %p136 = scmp.eq.s32.totalorder %s25, 0
      %p137 = por %p135, %p136
      %s138 = ssub.s32 %s26, %s38
      %p139 = scmp.eq.s32.totalorder %s138, 0
      %s141 = sadd.s32 %s140, 1
      %s142 = scalar_select %p139, %s140, %s141
      %p145 = pneg %p139
      %p146 = scmp.eq.s32.totalorder %s19, 15
      %p147 = por %p145, %p146
      %p148 = scmp.ne.s32.totalorder %s140, %s143
      %p149 = scmp.eq.s32.totalorder %s19, 0
      %p150 = por %p148, %p149
      %p151 = scmp.ne.s32.totalorder %s140, %s143
      %p152 = scmp.eq.s32.totalorder %s24, 15
      %p153 = por %p151, %p152
      %p154 = scmp.ne.s32.totalorder %s143, %s144
      %p155 = scmp.eq.s32.totalorder %s24, 0
      %p156 = por %p154, %p155
      %p157 = scmp.ne.s32.totalorder %s143, %s144
      %p158 = scmp.eq.s32.totalorder %s25, 15
      %p159 = por %p157, %p158
      %p161 = scmp.ne.s32.totalorder %s144, %s160
      %p162 = scmp.eq.s32.totalorder %s25, 0
      %p163 = por %p161, %p162
      %s164 = ssub.s32 %s26, %s38
      %p165 = scmp.eq.s32.totalorder %s164, 0
      %s167 = sadd.s32 %s166, 1
      %s168 = scalar_select %p165, %s166, %s167
      %p171 = pneg %p165
      %p172 = scmp.eq.s32.totalorder %s19, 15
      %p173 = por %p171, %p172
      %p174 = scmp.ne.s32.totalorder %s166, %s169
      %p175 = scmp.eq.s32.totalorder %s19, 0
      %p176 = por %p174, %p175
      %p177 = scmp.ne.s32.totalorder %s166, %s169
      %p178 = scmp.eq.s32.totalorder %s24, 15
      %p179 = por %p177, %p178
      %p180 = scmp.ne.s32.totalorder %s169, %s170
      %p181 = scmp.eq.s32.totalorder %s24, 0
      %p182 = por %p180, %p181
      %p183 = scmp.ne.s32.totalorder %s169, %s170
      %p184 = scmp.eq.s32.totalorder %s25, 15
      %p185 = por %p183, %p184
      %p187 = scmp.ne.s32.totalorder %s170, %s186
      %p188 = scmp.eq.s32.totalorder %s25, 0
      %p189 = por %p187, %p188
      %s190 = ssub.s32 %s27, %s34
      %p191 = scmp.eq.s32.totalorder %s190, 0
      %s193 = sadd.s32 %s192, 1
      %s194 = scalar_select %p191, %s192, %s193
      %p197 = pneg %p191
      %p198 = scmp.eq.s32.totalorder %s19, 15
      %p199 = por %p197, %p198
      %p200 = scmp.ne.s32.totalorder %s192, %s195
      %p201 = scmp.eq.s32.totalorder %s19, 0
      %p202 = por %p200, %p201
      %p203 = scmp.ne.s32.totalorder %s192, %s195
      %p204 = scmp.eq.s32.totalorder %s24, 15
      %p205 = por %p203, %p204
      %p206 = scmp.ne.s32.totalorder %s195, %s196
      %p207 = scmp.eq.s32.totalorder %s24, 0
      %p208 = por %p206, %p207
      %p209 = scmp.ne.s32.totalorder %s195, %s196
      %p210 = scmp.eq.s32.totalorder %s25, 15
      %p211 = por %p209, %p210
      %p213 = scmp.ne.s32.totalorder %s196, %s212
      %p214 = scmp.eq.s32.totalorder %s25, 0
      %p215 = por %p213, %p214
      %s216 = ssub.s32 %s27, %s34
      %p217 = scmp.eq.s32.totalorder %s216, 0
      %s219 = sadd.s32 %s218, 1
      %s220 = scalar_select %p217, %s218, %s219
      %p223 = pneg %p217
      %p224 = scmp.eq.s32.totalorder %s19, 15
      %p225 = por %p223, %p224
      %p226 = scmp.ne.s32.totalorder %s218, %s221
      %p227 = scmp.eq.s32.totalorder %s19, 0
      %p228 = por %p226, %p227
      %p229 = scmp.ne.s32.totalorder %s218, %s221
      %p230 = scmp.eq.s32.totalorder %s24, 15
      %p231 = por %p229, %p230
      %p232 = scmp.ne.s32.totalorder %s221, %s222
      %p233 = scmp.eq.s32.totalorder %s24, 0
      %p234 = por %p232, %p233
      %p235 = scmp.ne.s32.totalorder %s221, %s222
      %p236 = scmp.eq.s32.totalorder %s25, 15
      %p237 = por %p235, %p236
      %p239 = scmp.ne.s32.totalorder %s222, %s238
      %p240 = scmp.eq.s32.totalorder %s25, 0
      %p241 = por %p239, %p240
      %s242 = ssub.s32 %s27, %s34
      %p243 = scmp.eq.s32.totalorder %s242, 0
      %s245 = sadd.s32 %s244, 1
      %s246 = scalar_select %p243, %s244, %s245
      %p249 = pneg %p243
      %p250 = scmp.eq.s32.totalorder %s19, 15
      %p251 = por %p249, %p250
      %p252 = scmp.ne.s32.totalorder %s244, %s247
      %p253 = scmp.eq.s32.totalorder %s19, 0
      %p254 = por %p252, %p253
      %p255 = scmp.ne.s32.totalorder %s244, %s247
      %p256 = scmp.eq.s32.totalorder %s24, 15
      %p257 = por %p255, %p256
      %p258 = scmp.ne.s32.totalorder %s247, %s248
      %p259 = scmp.eq.s32.totalorder %s24, 0
      %p260 = por %p258, %p259
      %p261 = scmp.ne.s32.totalorder %s247, %s248
      %p262 = scmp.eq.s32.totalorder %s25, 15
      %p263 = por %p261, %p262
      %p265 = scmp.ne.s32.totalorder %s248, %s264
      %p266 = scmp.eq.s32.totalorder %s25, 0
      %p267 = por %p265, %p266
      %s268 = ssub.s32 %s26, %s38
      %s269 = ssub.s32 %s27, %s34
      %s270 = sor.u32 %s268, %s269
      %p271 = scmp.eq.s32.totalorder %s270, 0
      %s273 = sadd.s32 %s272, 1
      %s274 = scalar_select %p271, %s272, %s273
      %p277 = pneg %p271
      %p278 = scmp.eq.s32.totalorder %s19, 15
      %p279 = por %p277, %p278
      %p280 = scmp.ne.s32.totalorder %s272, %s275
      %p281 = scmp.eq.s32.totalorder %s19, 0
      %p282 = por %p280, %p281
      %p283 = scmp.ne.s32.totalorder %s272, %s275
      %p284 = scmp.eq.s32.totalorder %s24, 15
      %p285 = por %p283, %p284
      %p286 = scmp.ne.s32.totalorder %s275, %s276
      %p287 = scmp.eq.s32.totalorder %s24, 0
      %p288 = por %p286, %p287
      %p289 = scmp.ne.s32.totalorder %s275, %s276
      %p290 = scmp.eq.s32.totalorder %s25, 15
      %p291 = por %p289, %p290
      %p293 = scmp.ne.s32.totalorder %s276, %s292
      %p294 = scmp.eq.s32.totalorder %s25, 0
      %p295 = por %p293, %p294
      %p296 = scmp.le.s32.totalorder 1, %s19
      %p297 = scmp.lt.s32.totalorder %s19, 17
      %p298 = pnand %p296, %p297
      %p299 = pneg %p298
      // Predicated region
      $region9: #{tpu_custom_call.1} parent=5 // pred_check
        _
      $region10: #{tpu_custom_call.1} parent=5 // pred_check_branch
        %301 = sbr.rel (%p298) target = $region12
      $region11: #{tpu_custom_call.1} parent=5 // pred_region
        %s302 = ssub.s32 %s19, 1
        // Predicated region
        $region13: #{tpu_custom_call.1} parent=11 // pred_check
          %p303 = pneg %p52
        $region14: #{tpu_custom_call.1} parent=11 // pred_check_branch
          %305 = sbr.rel (%p303) target = $region16
        $region15: #{tpu_custom_call.1} parent=11 // pred_region
          %s307 = ssub.s32 64, 64
          %308 = vsyncadd [#allocation4], %s307
          %s310 = sshll.u32 %s0, 4
          %s311 = int_to_ptr.vmem [resolvable:$true] %s310
          %313 = dma.vmem_to_smem %s311, 64, [#allocation2], [#allocation4]
        $region16: #{tpu_custom_call.1} parent=11 // pred_fallthru
          _
      $region12: #{tpu_custom_call.1} parent=5 // pred_fallthru
        _
      %p314 = scmp.lt.s32.totalorder %s19, 16
      // Predicated region
      $region17: #{tpu_custom_call.1} parent=5 // pred_check
        %p315 = pneg %p314
      $region18: #{tpu_custom_call.1} parent=5 // pred_check_branch
        %317 = sbr.rel (%p315) target = $region20
      $region19: #{tpu_custom_call.1} parent=5 // pred_region
        // Predicated region
        $region21: #{tpu_custom_call.1} parent=19 // pred_check
          %p318 = pneg %p72
        $region22: #{tpu_custom_call.1} parent=19 // pred_check_branch
          %320 = sbr.rel (%p318) target = $region24
        $region23: #{tpu_custom_call.1} parent=19 // pred_region
          %s321 = smul.u32 8, %s26
          %p322 = scmp.lt.s32.totalorder %s321, 31
          %s323 = scalar_select %p322, %s321, 31
          %s324 = smul.addr %s323, 8
          %s325 = scalar_lea.vmem %s1, %s324
          %s326 = smul.u32 8, %s26
        $region24: #{tpu_custom_call.1} parent=19 // pred_fallthru
          _
        // Predicated region
        $region25: #{tpu_custom_call.1} parent=19 // pred_check
          %p327 = pneg %p98
        $region26: #{tpu_custom_call.1} parent=19 // pred_check_branch
          %329 = sbr.rel (%p327) target = $region28
        $region27: #{tpu_custom_call.1} parent=19 // pred_region
          %p330 = scmp.lt.s32.totalorder %s27, 3
          %s331 = scalar_select %p330, %s27, 3
          %s332 = smul.addr %s331, 2
          %s333 = scalar_lea.vmem %s2, %s332
        $region28: #{tpu_custom_call.1} parent=19 // pred_fallthru
          _
        // Predicated region
        $region29: #{tpu_custom_call.1} parent=19 // pred_check
          %p334 = pneg %p124
        $region30: #{tpu_custom_call.1} parent=19 // pred_check_branch
          %336 = sbr.rel (%p334) target = $region32
        $region31: #{tpu_custom_call.1} parent=19 // pred_region
          %s337 = smul.u32 8, %s26
          %p338 = scmp.lt.s32.totalorder %s337, 31
          %s339 = scalar_select %p338, %s337, 31
          %s340 = smul.addr %s339, 8
          %s341 = scalar_lea.vmem %s3, %s340
          %s342 = smul.u32 8, %s26
        $region32: #{tpu_custom_call.1} parent=19 // pred_fallthru
          _
        // Predicated region
        $region33: #{tpu_custom_call.1} parent=19 // pred_check
          %p343 = pneg %p150
        $region34: #{tpu_custom_call.1} parent=19 // pred_check_branch
          %345 = sbr.rel (%p343) target = $region36
        $region35: #{tpu_custom_call.1} parent=19 // pred_region
          %s346 = smul.u32 8, %s26
          %p347 = scmp.lt.s32.totalorder %s346, 31
          %s348 = scalar_select %p347, %s346, 31
          %s349 = smul.addr %s348, 8
          %s350 = scalar_lea.vmem %s4, %s349
          %s351 = smul.u32 8, %s26
        $region36: #{tpu_custom_call.1} parent=19 // pred_fallthru
          _
        // Predicated region
        $region37: #{tpu_custom_call.1} parent=19 // pred_check
          %p352 = pneg %p176
        $region38: #{tpu_custom_call.1} parent=19 // pred_check_branch
          %354 = sbr.rel (%p352) target = $region40
        $region39: #{tpu_custom_call.1} parent=19 // pred_region
          %s355 = smul.u32 8, %s26
          %p356 = scmp.lt.s32.totalorder %s355, 31
          %s357 = scalar_select %p356, %s355, 31
          %s358 = smul.addr %s357, 8
          %s359 = scalar_lea.vmem %s5, %s358
          %s360 = smul.u32 8, %s26
        $region40: #{tpu_custom_call.1} parent=19 // pred_fallthru
          _
        // Predicated region
        $region41: #{tpu_custom_call.1} parent=19 // pred_check
          %p361 = pneg %p202
        $region42: #{tpu_custom_call.1} parent=19 // pred_check_branch
          %363 = sbr.rel (%p361) target = $region44
        $region43: #{tpu_custom_call.1} parent=19 // pred_region
          %p364 = scmp.lt.s32.totalorder %s27, 3
          %s365 = scalar_select %p364, %s27, 3
          %s366 = smul.addr %s365, 4
          %s367 = scalar_lea.vmem %s6, %s366
        $region44: #{tpu_custom_call.1} parent=19 // pred_fallthru
          _
        // Predicated region
        $region45: #{tpu_custom_call.1} parent=19 // pred_check
          %p368 = pneg %p228
        $region46: #{tpu_custom_call.1} parent=19 // pred_check_branch
          %370 = sbr.rel (%p368) target = $region48
        $region47: #{tpu_custom_call.1} parent=19 // pred_region
          %p371 = scmp.lt.s32.totalorder %s27, 3
          %s372 = scalar_select %p371, %s27, 3
          %s373 = smul.addr %s372, 4
          %s374 = scalar_lea.vmem %s7, %s373
        $region48: #{tpu_custom_call.1} parent=19 // pred_fallthru
          _
        // Predicated region
        $region49: #{tpu_custom_call.1} parent=19 // pred_check
          %p375 = pneg %p254
        $region50: #{tpu_custom_call.1} parent=19 // pred_check_branch
          %377 = sbr.rel (%p375) target = $region52
        $region51: #{tpu_custom_call.1} parent=19 // pred_region
          %p378 = scmp.lt.s32.totalorder %s27, 3
          %s379 = scalar_select %p378, %s27, 3
          %s380 = smul.addr %s379, 4
          %s381 = scalar_lea.vmem %s8, %s380
        $region52: #{tpu_custom_call.1} parent=19 // pred_fallthru
          _
      $region20: #{tpu_custom_call.1} parent=5 // pred_fallthru
        _
      %p382 = scmp.le.s32.totalorder 1, %s19
      %p383 = scmp.lt.s32.totalorder %s19, 17
      %p384 = pnand %p382, %p383
      %p385 = pneg %p384
      // Predicated region
      $region53: #{tpu_custom_call.1} parent=5 // pred_check
        _
      $region54: #{tpu_custom_call.1} parent=5 // pred_check_branch
        %387 = sbr.rel (%p384) target = $region56
      $region55: #{tpu_custom_call.1} parent=5 // pred_region
        %s388 = ssub.s32 %s19, 1
        // Predicated region
        $region57: #{tpu_custom_call.1} parent=55 // pred_check
          %p389 = pneg %p52
        $region58: #{tpu_custom_call.1} parent=55 // pred_check_branch
          %391 = sbr.rel (%p389) target = $region60
        $region59: #{tpu_custom_call.1} parent=55 // pred_region
          %392 = dma.done [#allocation4], 64
        $region60: #{tpu_custom_call.1} parent=55 // pred_fallthru
          _
        %393 = sfence
        %p394 = pneg %p52
        %p395 = pneg %p49
        %s396 = smul.u32 8, %s28
        %p397 = scmp.lt.s32.totalorder %s396, 31
        %s398 = scalar_select %p397, %s396, 31
        %s399 = smul.addr %s398, 8
        %s400 = scalar_lea.vmem %s1, %s399
        %p401 = pneg %p78
        %p402 = pneg %p75
        %p403 = scmp.lt.s32.totalorder %s29, 3
        %s404 = scalar_select %p403, %s29, 3
        %s405 = smul.addr %s404, 2
        %s406 = scalar_lea.vmem %s2, %s405
        %p407 = pneg %p104
        %p408 = pneg %p101
        %s409 = smul.u32 8, %s28
        %p410 = scmp.lt.s32.totalorder %s409, 31
        %s411 = scalar_select %p410, %s409, 31
        %s412 = smul.addr %s411, 8
        %s413 = scalar_lea.vmem %s3, %s412
        %p414 = pneg %p130
        %p415 = pneg %p127
        %s416 = smul.u32 8, %s28
        %p417 = scmp.lt.s32.totalorder %s416, 31
        %s418 = scalar_select %p417, %s416, 31
        %s419 = smul.addr %s418, 8
        %s420 = scalar_lea.vmem %s4, %s419
        %p421 = pneg %p156
        %p422 = pneg %p153
        %s423 = smul.u32 8, %s28
        %p424 = scmp.lt.s32.totalorder %s423, 31
        %s425 = scalar_select %p424, %s423, 31
        %s426 = smul.addr %s425, 8
        %s427 = scalar_lea.vmem %s5, %s426
        %p428 = pneg %p182
        %p429 = pneg %p179
        %p430 = scmp.lt.s32.totalorder %s29, 3
        %s431 = scalar_select %p430, %s29, 3
        %s432 = smul.addr %s431, 4
        %s433 = scalar_lea.vmem %s6, %s432
        %p434 = pneg %p208
        %p435 = pneg %p205
        %p436 = scmp.lt.s32.totalorder %s29, 3
        %s437 = scalar_select %p436, %s29, 3
        %s438 = smul.addr %s437, 4
        %s439 = scalar_lea.vmem %s7, %s438
        %p440 = pneg %p234
        %p441 = pneg %p231
        %p442 = scmp.lt.s32.totalorder %s29, 3
        %s443 = scalar_select %p442, %s29, 3
        %s444 = smul.addr %s443, 4
        %s445 = scalar_lea.vmem %s8, %s444
        %p446 = pneg %p260
        %p447 = pneg %p257
        %p448 = pneg %p288
        %p449 = pneg %p285
        %s450 = sand.u32 %s275, 1
        %s451 = scalar_lea.sflag [#allocation3], %s450
        %s452 = sand.u32 %s275, 1
        %s453 = smul.addr %s452, 64
        %s454 = scalar_lea.vmem [#allocation5], %s453
        %s455 = smul.u32 8, %s28
        %p456 = scmp.lt.s32.totalorder %s455, 31
        %s457 = scalar_select %p456, %s455, 31
        %s458 = smul.addr %s457, 8
        %s459 = scalar_lea.vmem %s1, %s458
        %s460 = smul.u32 8, %s28
        %p461 = scmp.lt.s32.totalorder %s29, 3
        %s462 = scalar_select %p461, %s29, 3
        %s463 = smul.addr %s462, 2
        %s464 = scalar_lea.vmem %s2, %s463
        %s465 = smul.u32 8, %s28
        %p466 = scmp.lt.s32.totalorder %s465, 31
        %s467 = scalar_select %p466, %s465, 31
        %s468 = smul.addr %s467, 8
        %s469 = scalar_lea.vmem %s3, %s468
        %s470 = smul.u32 8, %s28
        %s471 = smul.u32 8, %s28
        %p472 = scmp.lt.s32.totalorder %s471, 31
        %s473 = scalar_select %p472, %s471, 31
        %s474 = smul.addr %s473, 8
        %s475 = scalar_lea.vmem %s4, %s474
        %s476 = smul.u32 8, %s28
        %s477 = smul.u32 8, %s28
        %p478 = scmp.lt.s32.totalorder %s477, 31
        %s479 = scalar_select %p478, %s477, 31
        %s480 = smul.addr %s479, 8
        %s481 = scalar_lea.vmem %s5, %s480
        %s482 = smul.u32 8, %s28
        %p483 = scmp.lt.s32.totalorder %s29, 3
        %s484 = scalar_select %p483, %s29, 3
        %s485 = smul.addr %s484, 4
        %s486 = scalar_lea.vmem %s6, %s485
        %p487 = scmp.lt.s32.totalorder %s29, 3
        %s488 = scalar_select %p487, %s29, 3
        %s489 = smul.addr %s488, 4
        %s490 = scalar_lea.vmem %s7, %s489
        %p491 = scmp.lt.s32.totalorder %s29, 3
        %s492 = scalar_select %p491, %s29, 3
        %s493 = smul.addr %s492, 4
        %s494 = scalar_lea.vmem %s8, %s493
        %s495 = smul.u32 8, %s28
        %v496 = vld [vmem:[%s459] sm:$0xff]
        %v497 = vld [vmem:[%s459 + $0x8] sm:$0xff]
        %v498 = vld [vmem:[%s459 + $0x10] sm:$0xff]
        %v499 = vld [vmem:[%s459 + $0x18] sm:$0xff]
        %v500 = vld [vmem:[%s459 + $0x20] sm:$0xff]
        %v501 = vld [vmem:[%s459 + $0x28] sm:$0xff]
        %v502 = vld [vmem:[%s459 + $0x30] sm:$0xff]
        %v503 = vld [vmem:[%s459 + $0x38] sm:$0xff]
        %v504 = vld [vmem:[%s464] sm:$0x3]
        %506 = vset.pattern.permute.xlu0 0
        %507 = vperm.xlu0 %506, %v496
        %v508 = vpop.permute.xlu0 %507
        %511 = vset.pattern.permute.xlu0 0
        %512 = vperm.xlu0 %511, %v497
        %v513 = vpop.permute.xlu0 %512
        %516 = vset.pattern.permute.xlu0 0
        %517 = vperm.xlu0 %516, %v498
        %v518 = vpop.permute.xlu0 %517
        %521 = vset.pattern.permute.xlu0 0
        %522 = vperm.xlu0 %521, %v499
        %v523 = vpop.permute.xlu0 %522
        %526 = vset.pattern.permute.xlu0 0
        %527 = vperm.xlu0 %526, %v500
        %v528 = vpop.permute.xlu0 %527
        %531 = vset.pattern.permute.xlu0 0
        %532 = vperm.xlu0 %531, %v501
        %v533 = vpop.permute.xlu0 %532
        %536 = vset.pattern.permute.xlu0 0
        %537 = vperm.xlu0 %536, %v502
        %v538 = vpop.permute.xlu0 %537
        %541 = vset.pattern.permute.xlu0 0
        %542 = vperm.xlu0 %541, %v503
        %v543 = vpop.permute.xlu0 %542
        %v545 = vlaneseq
        %v546 = vshrl.u32 %v545, 7
        %v547 = vsub.s32 0, %v546
        %v548 = vrot.slane %v504, %v547
        %v549 = vmul.f32 %v508, %v548
        %v550 = vmul.f32 %v513, %v548
        %v551 = vmul.f32 %v518, %v548
        %v552 = vmul.f32 %v523, %v548
        %v553 = vmul.f32 %v528, %v548
        %v554 = vmul.f32 %v533, %v548
        %v555 = vmul.f32 %v538, %v548
        %v556 = vmul.f32 %v543, %v548
        %557 = vset.pattern.permute.xlu0 1
        %558 = vperm.xlu0 %557, %v496
        %v559 = vpop.permute.xlu0 %558
        %561 = vset.pattern.permute.xlu0 1
        %562 = vperm.xlu0 %561, %v497
        %v563 = vpop.permute.xlu0 %562
        %565 = vset.pattern.permute.xlu0 1
        %566 = vperm.xlu0 %565, %v498
        %v567 = vpop.permute.xlu0 %566
        %569 = vset.pattern.permute.xlu0 1
        %570 = vperm.xlu0 %569, %v499
        %v571 = vpop.permute.xlu0 %570
        %573 = vset.pattern.permute.xlu0 1
        %574 = vperm.xlu0 %573, %v500
        %v575 = vpop.permute.xlu0 %574
        %577 = vset.pattern.permute.xlu0 1
        %578 = vperm.xlu0 %577, %v501
        %v579 = vpop.permute.xlu0 %578
        %581 = vset.pattern.permute.xlu0 1
        %582 = vperm.xlu0 %581, %v502
        %v583 = vpop.permute.xlu0 %582
        %585 = vset.pattern.permute.xlu0 1
        %586 = vperm.xlu0 %585, %v503
        %v587 = vpop.permute.xlu0 %586
        %v589 = vlaneseq
        %v590 = vshrl.u32 %v589, 7
        %v591 = vsub.s32 1, %v590
        %v592 = vrot.slane %v504, %v591
        %v593 = vmul.f32 %v559, %v592
        %v594 = vmul.f32 %v563, %v592
        %v595 = vmul.f32 %v567, %v592
        %v596 = vmul.f32 %v571, %v592
        %v597 = vmul.f32 %v575, %v592
        %v598 = vmul.f32 %v579, %v592
        %v599 = vmul.f32 %v583, %v592
        %v600 = vmul.f32 %v587, %v592
        %v601 = vld [vmem:[%s469] sm:$0xff]
        %v602 = vld [vmem:[%s469 + $0x8] sm:$0xff]
        %v603 = vld [vmem:[%s469 + $0x10] sm:$0xff]
        %v604 = vld [vmem:[%s469 + $0x18] sm:$0xff]
        %v605 = vld [vmem:[%s469 + $0x20] sm:$0xff]
        %v606 = vld [vmem:[%s469 + $0x28] sm:$0xff]
        %v607 = vld [vmem:[%s469 + $0x30] sm:$0xff]
        %v608 = vld [vmem:[%s469 + $0x38] sm:$0xff]
        %v609 = vld [vmem:[%s475] sm:$0xff]
        %v610 = vld [vmem:[%s475 + $0x8] sm:$0xff]
        %v611 = vld [vmem:[%s475 + $0x10] sm:$0xff]
        %v612 = vld [vmem:[%s475 + $0x18] sm:$0xff]
        %v613 = vld [vmem:[%s475 + $0x20] sm:$0xff]
        %v614 = vld [vmem:[%s475 + $0x28] sm:$0xff]
        %v615 = vld [vmem:[%s475 + $0x30] sm:$0xff]
        %v616 = vld [vmem:[%s475 + $0x38] sm:$0xff]
        %v617 = vld [vmem:[%s481] sm:$0xff]
        %v618 = vld [vmem:[%s481 + $0x8] sm:$0xff]
        %v619 = vld [vmem:[%s481 + $0x10] sm:$0xff]
        %v620 = vld [vmem:[%s481 + $0x18] sm:$0xff]
        %v621 = vld [vmem:[%s481 + $0x20] sm:$0xff]
        %v622 = vld [vmem:[%s481 + $0x28] sm:$0xff]
        %v623 = vld [vmem:[%s481 + $0x30] sm:$0xff]
        %v624 = vld [vmem:[%s481 + $0x38] sm:$0xff]
        %v625 = vld [vmem:[%s486] sm:$0xf]
        %v626 = vld [vmem:[%s490] sm:$0xf]
        %v627 = vld [vmem:[%s494] sm:$0xf]
        %629 = vset.pattern.permute.xlu0 0
        %630 = vperm.xlu0 %629, %v601
        %v631 = vpop.permute.xlu0 %630
        %634 = vset.pattern.permute.xlu0 0
        %635 = vperm.xlu0 %634, %v602
        %v636 = vpop.permute.xlu0 %635
        %639 = vset.pattern.permute.xlu0 0
        %640 = vperm.xlu0 %639, %v603
        %v641 = vpop.permute.xlu0 %640
        %644 = vset.pattern.permute.xlu0 0
        %645 = vperm.xlu0 %644, %v604
        %v646 = vpop.permute.xlu0 %645
        %649 = vset.pattern.permute.xlu0 0
        %650 = vperm.xlu0 %649, %v605
        %v651 = vpop.permute.xlu0 %650
        %654 = vset.pattern.permute.xlu0 0
        %655 = vperm.xlu0 %654, %v606
        %v656 = vpop.permute.xlu0 %655
        %659 = vset.pattern.permute.xlu0 0
        %660 = vperm.xlu0 %659, %v607
        %v661 = vpop.permute.xlu0 %660
        %664 = vset.pattern.permute.xlu0 0
        %665 = vperm.xlu0 %664, %v608
        %v666 = vpop.permute.xlu0 %665
        %v668 = vlaneseq
        %v669 = vshrl.u32 %v668, 7
        %v670 = vsub.s32 0, %v669
        %v671 = vrot.slane %v625, %v670
        %v672 = vadd.f32 %v631, %v671
        %v673 = vadd.f32 %v636, %v671
        %v674 = vadd.f32 %v641, %v671
        %v675 = vadd.f32 %v646, %v671
        %v676 = vadd.f32 %v651, %v671
        %v677 = vadd.f32 %v656, %v671
        %v678 = vadd.f32 %v661, %v671
        %v679 = vadd.f32 %v666, %v671
        %s680 = sld [smem:[#allocation2]]
        %v681 = vstv %s680
        %v682 = vmul.f32 %v681, %v549
        %v683 = vmul.f32 %v681, %v550
        %v684 = vmul.f32 %v681, %v551
        %v685 = vmul.f32 %v681, %v552
        %v686 = vmul.f32 %v681, %v553
        %v687 = vmul.f32 %v681, %v554
        %v688 = vmul.f32 %v681, %v555
        %v689 = vmul.f32 %v681, %v556
        %v690 = vadd.f32 %v672, %v682
        %v691 = vadd.f32 %v673, %v683
        %v692 = vadd.f32 %v674, %v684
        %v693 = vadd.f32 %v675, %v685
        %v694 = vadd.f32 %v676, %v686
        %v695 = vadd.f32 %v677, %v687
        %v696 = vadd.f32 %v678, %v688
        %v697 = vadd.f32 %v679, %v689
        %s698 = sld [smem:[#allocation2 + $0x1]]
        %v699 = vstv %s698
        %v700 = vmul.f32 %v699, %v593
        %v701 = vmul.f32 %v699, %v594
        %v702 = vmul.f32 %v699, %v595
        %v703 = vmul.f32 %v699, %v596
        %v704 = vmul.f32 %v699, %v597
        %v705 = vmul.f32 %v699, %v598
        %v706 = vmul.f32 %v699, %v599
        %v707 = vmul.f32 %v699, %v600
        %v708 = vadd.f32 %v690, %v700
        %v709 = vadd.f32 %v691, %v701
        %v710 = vadd.f32 %v692, %v702
        %v711 = vadd.f32 %v693, %v703
        %v712 = vadd.f32 %v694, %v704
        %v713 = vadd.f32 %v695, %v705
        %v714 = vadd.f32 %v696, %v706
        %v715 = vadd.f32 %v697, %v707
        %717 = vset.pattern.permute.xlu0 0
        %718 = vperm.xlu0 %717, %v609
        %v719 = vpop.permute.xlu0 %718
        %722 = vset.pattern.permute.xlu0 0
        %723 = vperm.xlu0 %722, %v610
        %v724 = vpop.permute.xlu0 %723
        %727 = vset.pattern.permute.xlu0 0
        %728 = vperm.xlu0 %727, %v611
        %v729 = vpop.permute.xlu0 %728
        %732 = vset.pattern.permute.xlu0 0
        %733 = vperm.xlu0 %732, %v612
        %v734 = vpop.permute.xlu0 %733
        %737 = vset.pattern.permute.xlu0 0
        %738 = vperm.xlu0 %737, %v613
        %v739 = vpop.permute.xlu0 %738
        %742 = vset.pattern.permute.xlu0 0
        %743 = vperm.xlu0 %742, %v614
        %v744 = vpop.permute.xlu0 %743
        %747 = vset.pattern.permute.xlu0 0
        %748 = vperm.xlu0 %747, %v615
        %v749 = vpop.permute.xlu0 %748
        %752 = vset.pattern.permute.xlu0 0
        %753 = vperm.xlu0 %752, %v616
        %v754 = vpop.permute.xlu0 %753
        %v756 = vlaneseq
        %v757 = vshrl.u32 %v756, 7
        %v758 = vsub.s32 0, %v757
        %v759 = vrot.slane %v626, %v758
        %v760 = vmul.f32 %v719, %v759
        %v761 = vmul.f32 %v724, %v759
        %v762 = vmul.f32 %v729, %v759
        %v763 = vmul.f32 %v734, %v759
        %v764 = vmul.f32 %v739, %v759
        %v765 = vmul.f32 %v744, %v759
        %v766 = vmul.f32 %v749, %v759
        %v767 = vmul.f32 %v754, %v759
        %769 = vset.pattern.permute.xlu0 0
        %770 = vperm.xlu0 %769, %v617
        %v771 = vpop.permute.xlu0 %770
        %774 = vset.pattern.permute.xlu0 0
        %775 = vperm.xlu0 %774, %v618
        %v776 = vpop.permute.xlu0 %775
        %779 = vset.pattern.permute.xlu0 0
        %780 = vperm.xlu0 %779, %v619
        %v781 = vpop.permute.xlu0 %780
        %784 = vset.pattern.permute.xlu0 0
        %785 = vperm.xlu0 %784, %v620
        %v786 = vpop.permute.xlu0 %785
        %789 = vset.pattern.permute.xlu0 0
        %790 = vperm.xlu0 %789, %v621
        %v791 = vpop.permute.xlu0 %790
        %794 = vset.pattern.permute.xlu0 0
        %795 = vperm.xlu0 %794, %v622
        %v796 = vpop.permute.xlu0 %795
        %799 = vset.pattern.permute.xlu0 0
        %800 = vperm.xlu0 %799, %v623
        %v801 = vpop.permute.xlu0 %800
        %804 = vset.pattern.permute.xlu0 0
        %805 = vperm.xlu0 %804, %v624
        %v806 = vpop.permute.xlu0 %805
        %v808 = vlaneseq
        %v809 = vshrl.u32 %v808, 7
        %v810 = vsub.s32 0, %v809
        %v811 = vrot.slane %v627, %v810
        %v812 = vmul.f32 %v771, %v811
        %v813 = vmul.f32 %v776, %v811
        %v814 = vmul.f32 %v781, %v811
        %v815 = vmul.f32 %v786, %v811
        %v816 = vmul.f32 %v791, %v811
        %v817 = vmul.f32 %v796, %v811
        %v818 = vmul.f32 %v801, %v811
        %v819 = vmul.f32 %v806, %v811
        %v820 = vadd.f32 %v760, %v812
        %v821 = vadd.f32 %v761, %v813
        %v822 = vadd.f32 %v762, %v814
        %v823 = vadd.f32 %v763, %v815
        %v824 = vadd.f32 %v764, %v816
        %v825 = vadd.f32 %v765, %v817
        %v826 = vadd.f32 %v766, %v818
        %v827 = vadd.f32 %v767, %v819
        %v828 = vmul.f32 %v708, 1.442695
        %v829 = vpow.pop %v828
        %v830 = vmul.f32 %v709, 1.442695
        %v831 = vpow.pop %v830
        %v832 = vmul.f32 %v710, 1.442695
        %v833 = vpow.pop %v832
        %v834 = vmul.f32 %v711, 1.442695
        %v835 = vpow.pop %v834
        %v836 = vmul.f32 %v712, 1.442695
        %v837 = vpow.pop %v836
        %v838 = vmul.f32 %v713, 1.442695
        %v839 = vpow.pop %v838
        %v840 = vmul.f32 %v714, 1.442695
        %v841 = vpow.pop %v840
        %v842 = vmul.f32 %v715, 1.442695
        %v843 = vpow.pop %v842
        %v844 = vmul.f32 %v829, %v820
        %v845 = vmul.f32 %v831, %v821
        %v846 = vmul.f32 %v833, %v822
        %v847 = vmul.f32 %v835, %v823
        %v848 = vmul.f32 %v837, %v824
        %v849 = vmul.f32 %v839, %v825
        %v850 = vmul.f32 %v841, %v826
        %v851 = vmul.f32 %v843, %v827
        %v852 = vadd.f32 %v844, 0.0
        %v853 = vadd.f32 %v845, 0.0
        %v854 = vadd.f32 %v846, 0.0
        %v855 = vadd.f32 %v847, 0.0
        %v856 = vadd.f32 %v848, 0.0
        %v857 = vadd.f32 %v849, 0.0
        %v858 = vadd.f32 %v850, 0.0
        %v859 = vadd.f32 %v851, 0.0
        %860 = vset.pattern.permute.xlu0 1
        %861 = vperm.xlu0 %860, %v601
        %v862 = vpop.permute.xlu0 %861
        %864 = vset.pattern.permute.xlu0 1
        %865 = vperm.xlu0 %864, %v602
        %v866 = vpop.permute.xlu0 %865
        %868 = vset.pattern.permute.xlu0 1
        %869 = vperm.xlu0 %868, %v603
        %v870 = vpop.permute.xlu0 %869
        %872 = vset.pattern.permute.xlu0 1
        %873 = vperm.xlu0 %872, %v604
        %v874 = vpop.permute.xlu0 %873
        %876 = vset.pattern.permute.xlu0 1
        %877 = vperm.xlu0 %876, %v605
        %v878 = vpop.permute.xlu0 %877
        %880 = vset.pattern.permute.xlu0 1
        %881 = vperm.xlu0 %880, %v606
        %v882 = vpop.permute.xlu0 %881
        %884 = vset.pattern.permute.xlu0 1
        %885 = vperm.xlu0 %884, %v607
        %v886 = vpop.permute.xlu0 %885
        %888 = vset.pattern.permute.xlu0 1
        %889 = vperm.xlu0 %888, %v608
        %v890 = vpop.permute.xlu0 %889
        %v892 = vlaneseq
        %v893 = vshrl.u32 %v892, 7
        %v894 = vsub.s32 1, %v893
        %v895 = vrot.slane %v625, %v894
        %v896 = vadd.f32 %v862, %v895
        %v897 = vadd.f32 %v866, %v895
        %v898 = vadd.f32 %v870, %v895
        %v899 = vadd.f32 %v874, %v895
        %v900 = vadd.f32 %v878, %v895
        %v901 = vadd.f32 %v882, %v895
        %v902 = vadd.f32 %v886, %v895
        %v903 = vadd.f32 %v890, %v895
        %s904 = sld [smem:[#allocation2 + $0x80]]
        %v905 = vstv %s904
        %v906 = vmul.f32 %v905, %v549
        %v907 = vmul.f32 %v905, %v550
        %v908 = vmul.f32 %v905, %v551
        %v909 = vmul.f32 %v905, %v552
        %v910 = vmul.f32 %v905, %v553
        %v911 = vmul.f32 %v905, %v554
        %v912 = vmul.f32 %v905, %v555
        %v913 = vmul.f32 %v905, %v556
        %v914 = vadd.f32 %v896, %v906
        %v915 = vadd.f32 %v897, %v907
        %v916 = vadd.f32 %v898, %v908
        %v917 = vadd.f32 %v899, %v909
        %v918 = vadd.f32 %v900, %v910
        %v919 = vadd.f32 %v901, %v911
        %v920 = vadd.f32 %v902, %v912
        %v921 = vadd.f32 %v903, %v913
        %s922 = sld [smem:[#allocation2 + $0x81]]
        %v923 = vstv %s922
        %v924 = vmul.f32 %v923, %v593
        %v925 = vmul.f32 %v923, %v594
        %v926 = vmul.f32 %v923, %v595
        %v927 = vmul.f32 %v923, %v596
        %v928 = vmul.f32 %v923, %v597
        %v929 = vmul.f32 %v923, %v598
        %v930 = vmul.f32 %v923, %v599
        %v931 = vmul.f32 %v923, %v600
        %v932 = vadd.f32 %v914, %v924
        %v933 = vadd.f32 %v915, %v925
        %v934 = vadd.f32 %v916, %v926
        %v935 = vadd.f32 %v917, %v927
        %v936 = vadd.f32 %v918, %v928
        %v937 = vadd.f32 %v919, %v929
        %v938 = vadd.f32 %v920, %v930
        %v939 = vadd.f32 %v921, %v931
        %940 = vset.pattern.permute.xlu0 1
        %941 = vperm.xlu0 %940, %v609
        %v942 = vpop.permute.xlu0 %941
        %944 = vset.pattern.permute.xlu0 1
        %945 = vperm.xlu0 %944, %v610
        %v946 = vpop.permute.xlu0 %945
        %948 = vset.pattern.permute.xlu0 1
        %949 = vperm.xlu0 %948, %v611
        %v950 = vpop.permute.xlu0 %949
        %952 = vset.pattern.permute.xlu0 1
        %953 = vperm.xlu0 %952, %v612
        %v954 = vpop.permute.xlu0 %953
        %956 = vset.pattern.permute.xlu0 1
        %957 = vperm.xlu0 %956, %v613
        %v958 = vpop.permute.xlu0 %957
        %960 = vset.pattern.permute.xlu0 1
        %961 = vperm.xlu0 %960, %v614
        %v962 = vpop.permute.xlu0 %961
        %964 = vset.pattern.permute.xlu0 1
        %965 = vperm.xlu0 %964, %v615
        %v966 = vpop.permute.xlu0 %965
        %968 = vset.pattern.permute.xlu0 1
        %969 = vperm.xlu0 %968, %v616
        %v970 = vpop.permute.xlu0 %969
        %v972 = vlaneseq
        %v973 = vshrl.u32 %v972, 7
        %v974 = vsub.s32 1, %v973
        %v975 = vrot.slane %v626, %v974
        %v976 = vmul.f32 %v942, %v975
        %v977 = vmul.f32 %v946, %v975
        %v978 = vmul.f32 %v950, %v975
        %v979 = vmul.f32 %v954, %v975
        %v980 = vmul.f32 %v958, %v975
        %v981 = vmul.f32 %v962, %v975
        %v982 = vmul.f32 %v966, %v975
        %v983 = vmul.f32 %v970, %v975
        %984 = vset.pattern.permute.xlu0 1
        %985 = vperm.xlu0 %984, %v617
        %v986 = vpop.permute.xlu0 %985
        %988 = vset.pattern.permute.xlu0 1
        %989 = vperm.xlu0 %988, %v618
        %v990 = vpop.permute.xlu0 %989
        %992 = vset.pattern.permute.xlu0 1
        %993 = vperm.xlu0 %992, %v619
        %v994 = vpop.permute.xlu0 %993
        %996 = vset.pattern.permute.xlu0 1
        %997 = vperm.xlu0 %996, %v620
        %v998 = vpop.permute.xlu0 %997
        %1000 = vset.pattern.permute.xlu0 1
        %1001 = vperm.xlu0 %1000, %v621
        %v1002 = vpop.permute.xlu0 %1001
        %1004 = vset.pattern.permute.xlu0 1
        %1005 = vperm.xlu0 %1004, %v622
        %v1006 = vpop.permute.xlu0 %1005
        %1008 = vset.pattern.permute.xlu0 1
        %1009 = vperm.xlu0 %1008, %v623
        %v1010 = vpop.permute.xlu0 %1009
        %1012 = vset.pattern.permute.xlu0 1
        %1013 = vperm.xlu0 %1012, %v624
        %v1014 = vpop.permute.xlu0 %1013
        %v1016 = vlaneseq
        %v1017 = vshrl.u32 %v1016, 7
        %v1018 = vsub.s32 1, %v1017
        %v1019 = vrot.slane %v627, %v1018
        %v1020 = vmul.f32 %v986, %v1019
        %v1021 = vmul.f32 %v990, %v1019
        %v1022 = vmul.f32 %v994, %v1019
        %v1023 = vmul.f32 %v998, %v1019
        %v1024 = vmul.f32 %v1002, %v1019
        %v1025 = vmul.f32 %v1006, %v1019
        %v1026 = vmul.f32 %v1010, %v1019
        %v1027 = vmul.f32 %v1014, %v1019
        %v1028 = vadd.f32 %v976, %v1020
        %v1029 = vadd.f32 %v977, %v1021
        %v1030 = vadd.f32 %v978, %v1022
        %v1031 = vadd.f32 %v979, %v1023
        %v1032 = vadd.f32 %v980, %v1024
        %v1033 = vadd.f32 %v981, %v1025
        %v1034 = vadd.f32 %v982, %v1026
        %v1035 = vadd.f32 %v983, %v1027
        %v1036 = vmul.f32 %v932, 1.442695
        %v1037 = vpow.pop %v1036
        %v1038 = vmul.f32 %v933, 1.442695
        %v1039 = vpow.pop %v1038
        %v1040 = vmul.f32 %v934, 1.442695
        %v1041 = vpow.pop %v1040
        %v1042 = vmul.f32 %v935, 1.442695
        %v1043 = vpow.pop %v1042
        %v1044 = vmul.f32 %v936, 1.442695
        %v1045 = vpow.pop %v1044
        %v1046 = vmul.f32 %v937, 1.442695
        %v1047 = vpow.pop %v1046
        %v1048 = vmul.f32 %v938, 1.442695
        %v1049 = vpow.pop %v1048
        %v1050 = vmul.f32 %v939, 1.442695
        %v1051 = vpow.pop %v1050
        %v1052 = vmul.f32 %v1037, %v1028
        %v1053 = vmul.f32 %v1039, %v1029
        %v1054 = vmul.f32 %v1041, %v1030
        %v1055 = vmul.f32 %v1043, %v1031
        %v1056 = vmul.f32 %v1045, %v1032
        %v1057 = vmul.f32 %v1047, %v1033
        %v1058 = vmul.f32 %v1049, %v1034
        %v1059 = vmul.f32 %v1051, %v1035
        %v1060 = vadd.f32 %v852, %v1052
        %v1061 = vadd.f32 %v853, %v1053
        %v1062 = vadd.f32 %v854, %v1054
        %v1063 = vadd.f32 %v855, %v1055
        %v1064 = vadd.f32 %v856, %v1056
        %v1065 = vadd.f32 %v857, %v1057
        %v1066 = vadd.f32 %v858, %v1058
        %v1067 = vadd.f32 %v859, %v1059
        %1068 = vset.pattern.permute.xlu0 2
        %1069 = vperm.xlu0 %1068, %v601
        %v1070 = vpop.permute.xlu0 %1069
        %1072 = vset.pattern.permute.xlu0 2
        %1073 = vperm.xlu0 %1072, %v602
        %v1074 = vpop.permute.xlu0 %1073
        %1076 = vset.pattern.permute.xlu0 2
        %1077 = vperm.xlu0 %1076, %v603
        %v1078 = vpop.permute.xlu0 %1077
        %1080 = vset.pattern.permute.xlu0 2
        %1081 = vperm.xlu0 %1080, %v604
        %v1082 = vpop.permute.xlu0 %1081
        %1084 = vset.pattern.permute.xlu0 2
        %1085 = vperm.xlu0 %1084, %v605
        %v1086 = vpop.permute.xlu0 %1085
        %1088 = vset.pattern.permute.xlu0 2
        %1089 = vperm.xlu0 %1088, %v606
        %v1090 = vpop.permute.xlu0 %1089
        %1092 = vset.pattern.permute.xlu0 2
        %1093 = vperm.xlu0 %1092, %v607
        %v1094 = vpop.permute.xlu0 %1093
        %1096 = vset.pattern.permute.xlu0 2
        %1097 = vperm.xlu0 %1096, %v608
        %v1098 = vpop.permute.xlu0 %1097
        %v1100 = vlaneseq
        %v1101 = vshrl.u32 %v1100, 7
        %v1102 = vsub.s32 2, %v1101
        %v1103 = vrot.slane %v625, %v1102
        %v1104 = vadd.f32 %v1070, %v1103
        %v1105 = vadd.f32 %v1074, %v1103
        %v1106 = vadd.f32 %v1078, %v1103
        %v1107 = vadd.f32 %v1082, %v1103
        %v1108 = vadd.f32 %v1086, %v1103
        %v1109 = vadd.f32 %v1090, %v1103
        %v1110 = vadd.f32 %v1094, %v1103
        %v1111 = vadd.f32 %v1098, %v1103
        %s1112 = sld [smem:[#allocation2 + $0x100]]
        %v1113 = vstv %s1112
        %v1114 = vmul.f32 %v1113, %v549
        %v1115 = vmul.f32 %v1113, %v550
        %v1116 = vmul.f32 %v1113, %v551
        %v1117 = vmul.f32 %v1113, %v552
        %v1118 = vmul.f32 %v1113, %v553
        %v1119 = vmul.f32 %v1113, %v554
        %v1120 = vmul.f32 %v1113, %v555
        %v1121 = vmul.f32 %v1113, %v556
        %v1122 = vadd.f32 %v1104, %v1114
        %v1123 = vadd.f32 %v1105, %v1115
        %v1124 = vadd.f32 %v1106, %v1116
        %v1125 = vadd.f32 %v1107, %v1117
        %v1126 = vadd.f32 %v1108, %v1118
        %v1127 = vadd.f32 %v1109, %v1119
        %v1128 = vadd.f32 %v1110, %v1120
        %v1129 = vadd.f32 %v1111, %v1121
        %s1130 = sld [smem:[#allocation2 + $0x101]]
        %v1131 = vstv %s1130
        %v1132 = vmul.f32 %v1131, %v593
        %v1133 = vmul.f32 %v1131, %v594
        %v1134 = vmul.f32 %v1131, %v595
        %v1135 = vmul.f32 %v1131, %v596
        %v1136 = vmul.f32 %v1131, %v597
        %v1137 = vmul.f32 %v1131, %v598
        %v1138 = vmul.f32 %v1131, %v599
        %v1139 = vmul.f32 %v1131, %v600
        %v1140 = vadd.f32 %v1122, %v1132
        %v1141 = vadd.f32 %v1123, %v1133
        %v1142 = vadd.f32 %v1124, %v1134
        %v1143 = vadd.f32 %v1125, %v1135
        %v1144 = vadd.f32 %v1126, %v1136
        %v1145 = vadd.f32 %v1127, %v1137
        %v1146 = vadd.f32 %v1128, %v1138
        %v1147 = vadd.f32 %v1129, %v1139
        %1148 = vset.pattern.permute.xlu0 2
        %1149 = vperm.xlu0 %1148, %v609
        %v1150 = vpop.permute.xlu0 %1149
        %1152 = vset.pattern.permute.xlu0 2
        %1153 = vperm.xlu0 %1152, %v610
        %v1154 = vpop.permute.xlu0 %1153
        %1156 = vset.pattern.permute.xlu0 2
        %1157 = vperm.xlu0 %1156, %v611
        %v1158 = vpop.permute.xlu0 %1157
        %1160 = vset.pattern.permute.xlu0 2
        %1161 = vperm.xlu0 %1160, %v612
        %v1162 = vpop.permute.xlu0 %1161
        %1164 = vset.pattern.permute.xlu0 2
        %1165 = vperm.xlu0 %1164, %v613
        %v1166 = vpop.permute.xlu0 %1165
        %1168 = vset.pattern.permute.xlu0 2
        %1169 = vperm.xlu0 %1168, %v614
        %v1170 = vpop.permute.xlu0 %1169
        %1172 = vset.pattern.permute.xlu0 2
        %1173 = vperm.xlu0 %1172, %v615
        %v1174 = vpop.permute.xlu0 %1173
        %1176 = vset.pattern.permute.xlu0 2
        %1177 = vperm.xlu0 %1176, %v616
        %v1178 = vpop.permute.xlu0 %1177
        %v1180 = vlaneseq
        %v1181 = vshrl.u32 %v1180, 7
        %v1182 = vsub.s32 2, %v1181
        %v1183 = vrot.slane %v626, %v1182
        %v1184 = vmul.f32 %v1150, %v1183
        %v1185 = vmul.f32 %v1154, %v1183
        %v1186 = vmul.f32 %v1158, %v1183
        %v1187 = vmul.f32 %v1162, %v1183
        %v1188 = vmul.f32 %v1166, %v1183
        %v1189 = vmul.f32 %v1170, %v1183
        %v1190 = vmul.f32 %v1174, %v1183
        %v1191 = vmul.f32 %v1178, %v1183
        %1192 = vset.pattern.permute.xlu0 2
        %1193 = vperm.xlu0 %1192, %v617
        %v1194 = vpop.permute.xlu0 %1193
        %1196 = vset.pattern.permute.xlu0 2
        %1197 = vperm.xlu0 %1196, %v618
        %v1198 = vpop.permute.xlu0 %1197
        %1200 = vset.pattern.permute.xlu0 2
        %1201 = vperm.xlu0 %1200, %v619
        %v1202 = vpop.permute.xlu0 %1201
        %1204 = vset.pattern.permute.xlu0 2
        %1205 = vperm.xlu0 %1204, %v620
        %v1206 = vpop.permute.xlu0 %1205
        %1208 = vset.pattern.permute.xlu0 2
        %1209 = vperm.xlu0 %1208, %v621
        %v1210 = vpop.permute.xlu0 %1209
        %1212 = vset.pattern.permute.xlu0 2
        %1213 = vperm.xlu0 %1212, %v622
        %v1214 = vpop.permute.xlu0 %1213
        %1216 = vset.pattern.permute.xlu0 2
        %1217 = vperm.xlu0 %1216, %v623
        %v1218 = vpop.permute.xlu0 %1217
        %1220 = vset.pattern.permute.xlu0 2
        %1221 = vperm.xlu0 %1220, %v624
        %v1222 = vpop.permute.xlu0 %1221
        %v1224 = vlaneseq
        %v1225 = vshrl.u32 %v1224, 7
        %v1226 = vsub.s32 2, %v1225
        %v1227 = vrot.slane %v627, %v1226
        %v1228 = vmul.f32 %v1194, %v1227
        %v1229 = vmul.f32 %v1198, %v1227
        %v1230 = vmul.f32 %v1202, %v1227
        %v1231 = vmul.f32 %v1206, %v1227
        %v1232 = vmul.f32 %v1210, %v1227
        %v1233 = vmul.f32 %v1214, %v1227
        %v1234 = vmul.f32 %v1218, %v1227
        %v1235 = vmul.f32 %v1222, %v1227
        %v1236 = vadd.f32 %v1184, %v1228
        %v1237 = vadd.f32 %v1185, %v1229
        %v1238 = vadd.f32 %v1186, %v1230
        %v1239 = vadd.f32 %v1187, %v1231
        %v1240 = vadd.f32 %v1188, %v1232
        %v1241 = vadd.f32 %v1189, %v1233
        %v1242 = vadd.f32 %v1190, %v1234
        %v1243 = vadd.f32 %v1191, %v1235
        %v1244 = vmul.f32 %v1140, 1.442695
        %v1245 = vpow.pop %v1244
        %v1246 = vmul.f32 %v1141, 1.442695
        %v1247 = vpow.pop %v1246
        %v1248 = vmul.f32 %v1142, 1.442695
        %v1249 = vpow.pop %v1248
        %v1250 = vmul.f32 %v1143, 1.442695
        %v1251 = vpow.pop %v1250
        %v1252 = vmul.f32 %v1144, 1.442695
        %v1253 = vpow.pop %v1252
        %v1254 = vmul.f32 %v1145, 1.442695
        %v1255 = vpow.pop %v1254
        %v1256 = vmul.f32 %v1146, 1.442695
        %v1257 = vpow.pop %v1256
        %v1258 = vmul.f32 %v1147, 1.442695
        %v1259 = vpow.pop %v1258
        %v1260 = vmul.f32 %v1245, %v1236
        %v1261 = vmul.f32 %v1247, %v1237
        %v1262 = vmul.f32 %v1249, %v1238
        %v1263 = vmul.f32 %v1251, %v1239
        %v1264 = vmul.f32 %v1253, %v1240
        %v1265 = vmul.f32 %v1255, %v1241
        %v1266 = vmul.f32 %v1257, %v1242
        %v1267 = vmul.f32 %v1259, %v1243
        %v1268 = vadd.f32 %v1060, %v1260
        %v1269 = vadd.f32 %v1061, %v1261
        %v1270 = vadd.f32 %v1062, %v1262
        %v1271 = vadd.f32 %v1063, %v1263
        %v1272 = vadd.f32 %v1064, %v1264
        %v1273 = vadd.f32 %v1065, %v1265
        %v1274 = vadd.f32 %v1066, %v1266
        %v1275 = vadd.f32 %v1067, %v1267
        %1276 = vset.pattern.permute.xlu0 3
        %1277 = vperm.xlu0 %1276, %v601
        %v1278 = vpop.permute.xlu0 %1277
        %1280 = vset.pattern.permute.xlu0 3
        %1281 = vperm.xlu0 %1280, %v602
        %v1282 = vpop.permute.xlu0 %1281
        %1284 = vset.pattern.permute.xlu0 3
        %1285 = vperm.xlu0 %1284, %v603
        %v1286 = vpop.permute.xlu0 %1285
        %1288 = vset.pattern.permute.xlu0 3
        %1289 = vperm.xlu0 %1288, %v604
        %v1290 = vpop.permute.xlu0 %1289
        %1292 = vset.pattern.permute.xlu0 3
        %1293 = vperm.xlu0 %1292, %v605
        %v1294 = vpop.permute.xlu0 %1293
        %1296 = vset.pattern.permute.xlu0 3
        %1297 = vperm.xlu0 %1296, %v606
        %v1298 = vpop.permute.xlu0 %1297
        %1300 = vset.pattern.permute.xlu0 3
        %1301 = vperm.xlu0 %1300, %v607
        %v1302 = vpop.permute.xlu0 %1301
        %1304 = vset.pattern.permute.xlu0 3
        %1305 = vperm.xlu0 %1304, %v608
        %v1306 = vpop.permute.xlu0 %1305
        %v1308 = vlaneseq
        %v1309 = vshrl.u32 %v1308, 7
        %v1310 = vsub.s32 3, %v1309
        %v1311 = vrot.slane %v625, %v1310
        %v1312 = vadd.f32 %v1278, %v1311
        %v1313 = vadd.f32 %v1282, %v1311
        %v1314 = vadd.f32 %v1286, %v1311
        %v1315 = vadd.f32 %v1290, %v1311
        %v1316 = vadd.f32 %v1294, %v1311
        %v1317 = vadd.f32 %v1298, %v1311
        %v1318 = vadd.f32 %v1302, %v1311
        %v1319 = vadd.f32 %v1306, %v1311
        %s1320 = sld [smem:[#allocation2 + $0x180]]
        %v1321 = vstv %s1320
        %v1322 = vmul.f32 %v1321, %v549
        %v1323 = vmul.f32 %v1321, %v550
        %v1324 = vmul.f32 %v1321, %v551
        %v1325 = vmul.f32 %v1321, %v552
        %v1326 = vmul.f32 %v1321, %v553
        %v1327 = vmul.f32 %v1321, %v554
        %v1328 = vmul.f32 %v1321, %v555
        %v1329 = vmul.f32 %v1321, %v556
        %v1330 = vadd.f32 %v1312, %v1322
        %v1331 = vadd.f32 %v1313, %v1323
        %v1332 = vadd.f32 %v1314, %v1324
        %v1333 = vadd.f32 %v1315, %v1325
        %v1334 = vadd.f32 %v1316, %v1326
        %v1335 = vadd.f32 %v1317, %v1327
        %v1336 = vadd.f32 %v1318, %v1328
        %v1337 = vadd.f32 %v1319, %v1329
        %s1338 = sld [smem:[#allocation2 + $0x181]]
        %v1339 = vstv %s1338
        %v1340 = vmul.f32 %v1339, %v593
        %v1341 = vmul.f32 %v1339, %v594
        %v1342 = vmul.f32 %v1339, %v595
        %v1343 = vmul.f32 %v1339, %v596
        %v1344 = vmul.f32 %v1339, %v597
        %v1345 = vmul.f32 %v1339, %v598
        %v1346 = vmul.f32 %v1339, %v599
        %v1347 = vmul.f32 %v1339, %v600
        %v1348 = vadd.f32 %v1330, %v1340
        %v1349 = vadd.f32 %v1331, %v1341
        %v1350 = vadd.f32 %v1332, %v1342
        %v1351 = vadd.f32 %v1333, %v1343
        %v1352 = vadd.f32 %v1334, %v1344
        %v1353 = vadd.f32 %v1335, %v1345
        %v1354 = vadd.f32 %v1336, %v1346
        %v1355 = vadd.f32 %v1337, %v1347
        %1356 = vset.pattern.permute.xlu0 3
        %1357 = vperm.xlu0 %1356, %v609
        %v1358 = vpop.permute.xlu0 %1357
        %1360 = vset.pattern.permute.xlu0 3
        %1361 = vperm.xlu0 %1360, %v610
        %v1362 = vpop.permute.xlu0 %1361
        %1364 = vset.pattern.permute.xlu0 3
        %1365 = vperm.xlu0 %1364, %v611
        %v1366 = vpop.permute.xlu0 %1365
        %1368 = vset.pattern.permute.xlu0 3
        %1369 = vperm.xlu0 %1368, %v612
        %v1370 = vpop.permute.xlu0 %1369
        %1372 = vset.pattern.permute.xlu0 3
        %1373 = vperm.xlu0 %1372, %v613
        %v1374 = vpop.permute.xlu0 %1373
        %1376 = vset.pattern.permute.xlu0 3
        %1377 = vperm.xlu0 %1376, %v614
        %v1378 = vpop.permute.xlu0 %1377
        %1380 = vset.pattern.permute.xlu0 3
        %1381 = vperm.xlu0 %1380, %v615
        %v1382 = vpop.permute.xlu0 %1381
        %1384 = vset.pattern.permute.xlu0 3
        %1385 = vperm.xlu0 %1384, %v616
        %v1386 = vpop.permute.xlu0 %1385
        %v1388 = vlaneseq
        %v1389 = vshrl.u32 %v1388, 7
        %v1390 = vsub.s32 3, %v1389
        %v1391 = vrot.slane %v626, %v1390
        %v1392 = vmul.f32 %v1358, %v1391
        %v1393 = vmul.f32 %v1362, %v1391
        %v1394 = vmul.f32 %v1366, %v1391
        %v1395 = vmul.f32 %v1370, %v1391
        %v1396 = vmul.f32 %v1374, %v1391
        %v1397 = vmul.f32 %v1378, %v1391
        %v1398 = vmul.f32 %v1382, %v1391
        %v1399 = vmul.f32 %v1386, %v1391
        %1400 = vset.pattern.permute.xlu0 3
        %1401 = vperm.xlu0 %1400, %v617
        %v1402 = vpop.permute.xlu0 %1401
        %1404 = vset.pattern.permute.xlu0 3
        %1405 = vperm.xlu0 %1404, %v618
        %v1406 = vpop.permute.xlu0 %1405
        %1408 = vset.pattern.permute.xlu0 3
        %1409 = vperm.xlu0 %1408, %v619
        %v1410 = vpop.permute.xlu0 %1409
        %1412 = vset.pattern.permute.xlu0 3
        %1413 = vperm.xlu0 %1412, %v620
        %v1414 = vpop.permute.xlu0 %1413
        %1416 = vset.pattern.permute.xlu0 3
        %1417 = vperm.xlu0 %1416, %v621
        %v1418 = vpop.permute.xlu0 %1417
        %1420 = vset.pattern.permute.xlu0 3
        %1421 = vperm.xlu0 %1420, %v622
        %v1422 = vpop.permute.xlu0 %1421
        %1424 = vset.pattern.permute.xlu0 3
        %1425 = vperm.xlu0 %1424, %v623
        %v1426 = vpop.permute.xlu0 %1425
        %1428 = vset.pattern.permute.xlu0 3
        %1429 = vperm.xlu0 %1428, %v624
        %v1430 = vpop.permute.xlu0 %1429
        %v1432 = vlaneseq
        %v1433 = vshrl.u32 %v1432, 7
        %v1434 = vsub.s32 3, %v1433
        %v1435 = vrot.slane %v627, %v1434
        %v1436 = vmul.f32 %v1402, %v1435
        %v1437 = vmul.f32 %v1406, %v1435
        %v1438 = vmul.f32 %v1410, %v1435
        %v1439 = vmul.f32 %v1414, %v1435
        %v1440 = vmul.f32 %v1418, %v1435
        %v1441 = vmul.f32 %v1422, %v1435
        %v1442 = vmul.f32 %v1426, %v1435
        %v1443 = vmul.f32 %v1430, %v1435
        %v1444 = vadd.f32 %v1392, %v1436
        %v1445 = vadd.f32 %v1393, %v1437
        %v1446 = vadd.f32 %v1394, %v1438
        %v1447 = vadd.f32 %v1395, %v1439
        %v1448 = vadd.f32 %v1396, %v1440
        %v1449 = vadd.f32 %v1397, %v1441
        %v1450 = vadd.f32 %v1398, %v1442
        %v1451 = vadd.f32 %v1399, %v1443
        %v1452 = vmul.f32 %v1348, 1.442695
        %v1453 = vpow.pop %v1452
        %v1454 = vmul.f32 %v1349, 1.442695
        %v1455 = vpow.pop %v1454
        %v1456 = vmul.f32 %v1350, 1.442695
        %v1457 = vpow.pop %v1456
        %v1458 = vmul.f32 %v1351, 1.442695
        %v1459 = vpow.pop %v1458
        %v1460 = vmul.f32 %v1352, 1.442695
        %v1461 = vpow.pop %v1460
        %v1462 = vmul.f32 %v1353, 1.442695
        %v1463 = vpow.pop %v1462
        %v1464 = vmul.f32 %v1354, 1.442695
        %v1465 = vpow.pop %v1464
        %v1466 = vmul.f32 %v1355, 1.442695
        %v1467 = vpow.pop %v1466
        %v1468 = vmul.f32 %v1453, %v1444
        %v1469 = vmul.f32 %v1455, %v1445
        %v1470 = vmul.f32 %v1457, %v1446
        %v1471 = vmul.f32 %v1459, %v1447
        %v1472 = vmul.f32 %v1461, %v1448
        %v1473 = vmul.f32 %v1463, %v1449
        %v1474 = vmul.f32 %v1465, %v1450
        %v1475 = vmul.f32 %v1467, %v1451
        %v1476 = vadd.f32 %v1268, %v1468
        %v1477 = vadd.f32 %v1269, %v1469
        %v1478 = vadd.f32 %v1270, %v1470
        %v1479 = vadd.f32 %v1271, %v1471
        %v1480 = vadd.f32 %v1272, %v1472
        %v1481 = vadd.f32 %v1273, %v1473
        %v1482 = vadd.f32 %v1274, %v1474
        %v1483 = vadd.f32 %v1275, %v1475
        %1484 = vst [vmem:[%s454] sm:$0xff] %v1476
        %1485 = vst [vmem:[%s454 + $0x8] sm:$0xff] %v1477
        %1486 = vst [vmem:[%s454 + $0x10] sm:$0xff] %v1478
        %1487 = vst [vmem:[%s454 + $0x18] sm:$0xff] %v1479
        %1488 = vst [vmem:[%s454 + $0x20] sm:$0xff] %v1480
        %1489 = vst [vmem:[%s454 + $0x28] sm:$0xff] %v1481
        %1490 = vst [vmem:[%s454 + $0x30] sm:$0xff] %v1482
        %1491 = vst [vmem:[%s454 + $0x38] sm:$0xff] %v1483
        %s1492 = sand.u32 %s275, 1
        %s1493 = scalar_lea.sflag [#allocation3], %s1492
        %s1494 = sand.u32 %s275, 1
        %s1495 = smul.addr %s1494, 64
        %s1496 = scalar_lea.vmem [#allocation5], %s1495
        // Predicated region
        $region61: #{tpu_custom_call.1} parent=55 // pred_check
          %p1497 = pneg %p285
        $region62: #{tpu_custom_call.1} parent=55 // pred_check_branch
          %1499 = sbr.rel (%p1497) target = $region64
        $region63: #{tpu_custom_call.1} parent=55 // pred_region
          %s1500 = smul.u32 8, %s28
          %s1502 = ssub.s32 1024, 1024
          %1503 = vsyncadd %s1493, %s1502
          %s1504 = smul.addr %s1500, 4
          %s1505 = sadd.s32 %s29, %s1504
          %s1506 = smul.addr %s1505, 128
          %s1507 = scalar_lea.hbm %s9, %s1506
          %s1508 = sshll.u32 %s1496, 4
          %s1509 = int_to_ptr.vmem [resolvable:$true] %s1508
          %1514 = dma.vmem_to_hbm [thread:$0]  %s1509, 1024, %s1507, %s1493, 128, 512, 8
        $region64: #{tpu_custom_call.1} parent=55 // pred_fallthru
          _
      $region56: #{tpu_custom_call.1} parent=5 // pred_fallthru
        _
      %p1515 = scmp.le.s32.totalorder 2, %s19
      // Predicated region
      $region65: #{tpu_custom_call.1} parent=5 // pred_check
        %p1516 = pneg %p1515
      $region66: #{tpu_custom_call.1} parent=5 // pred_check_branch
        %1518 = sbr.rel (%p1516) target = $region68
      $region67: #{tpu_custom_call.1} parent=5 // pred_region
        %s1519 = ssub.s32 %s19, 2
        // Predicated region
        $region69: #{tpu_custom_call.1} parent=67 // pred_check
          %p1520 = pneg %p291
        $region70: #{tpu_custom_call.1} parent=67 // pred_check_branch
          %1522 = sbr.rel (%p1520) target = $region72
        $region71: #{tpu_custom_call.1} parent=67 // pred_region
          %s1523 = sand.u32 %s276, 1
          %s1524 = scalar_lea.sflag [#allocation3], %s1523
          %s1525 = sand.u32 %s276, 1
          %s1526 = smul.addr %s1525, 64
          %s1527 = scalar_lea.vmem [#allocation5], %s1526
          %1528 = dma.done %s1524, 1024
        $region72: #{tpu_custom_call.1} parent=67 // pred_fallthru
          _
      $region68: #{tpu_custom_call.1} parent=5 // pred_fallthru
        _
    $region6: #{tpu_custom_call.1} parent=1 // loop_footer
      %s23 = sadd.s32 1, %s19
    $region7: #{tpu_custom_call.1} parent=1 // loop_footer_branch
      %18 = sbr.rel target = $region3
    $region8: #{tpu_custom_call.1} parent=1 // loop_exit
      _
    %1529 = vsyncpa [#allocation3], 1
    %s1530 = scalar_lea.sflag [#allocation3], 1
    %1531 = vsyncpa %s1530, 1
    %1532 = vsyncpa [#allocation4], 1
    %s1533 = scalar_lea.sflag [#allocation4], 1
    %1534 = vsyncpa %s1533, 1

</llo_original>
